<compile_context>
chip_gen: v5e
topology: v5e:2x2
jax: 0.10.0
libtpu: 0.0.40
codegen_flags: <defaults>
</compile_context>

<pallas_src>
import jax
import jax.numpy as jnp
from jax.experimental import pallas as pl
from jax.experimental.pallas import tpu as pltpu


def _basic_block_kernel(x_ref, m1_ref, s1_ref, b1_ref, m2_ref, s2_ref, b2_ref,
                        out_ref, xpad_ref, hpad_ref):
    # x_ref:    (bb, H, W*Cin)          f32, one batch block, rows=(b,y) lanes=(x,c)
    # m1_ref:   (3*W*Cin,  W*Cout)      bf16, conv1 banded matrix (taps stacked on K)
    # m2_ref:   (3*W*Cout, W*Cout)      bf16, conv2 banded matrix
    # s*/b*:    (1, W*Cout)             f32, folded BatchNorm scale / shift
    # out_ref:  (bb, H, W*Cout)         f32
    # xpad_ref: (bb, H+2, W*Cin)  VMEM scratch (row-padded input)
    # hpad_ref: (bb, H+2, W*Cout) VMEM scratch (row-padded conv1 intermediate)
    bb, H, WC_in = x_ref.shape
    WC_out = out_ref.shape[2]

    # Zero the y-padding rows up front (hoisted off the conv1->conv2 critical
    # path; redone every grid step so it is megacore-safe).
    zin = jnp.zeros((bb, 1, WC_in), jnp.float32)
    zout = jnp.zeros((bb, 1, WC_out), jnp.float32)
    xpad_ref[:, 0:1, :] = zin
    xpad_ref[:, H + 1:H + 2, :] = zin
    hpad_ref[:, 0:1, :] = zout
    hpad_ref[:, H + 1:H + 2, :] = zout

    x = x_ref[...]                                   # (bb, H, WC_in) f32 (residual)
    xpad_ref[:, 1:H + 1, :] = x

    # conv1 (3x3, pad=1): single MXU matmul with K = 3*W*Cin.  The three vertical
    # taps are lane-concatenated row-shifted views; horizontal taps and channel
    # mixing live in the banded matrix.  bf16 inputs, f32 accumulation.
    lhs1 = jnp.concatenate(
        [xpad_ref[:, 0:H, :], x, xpad_ref[:, 2:H + 2, :]],
        axis=-1).reshape(bb * H, 3 * WC_in).astype(jnp.bfloat16)
    h = jnp.dot(lhs1, m1_ref[...], preferred_element_type=jnp.float32)
    h = jnp.maximum(h * s1_ref[...] + b1_ref[...], 0.0)          # bn1 + relu (f32)

    h3 = h.reshape(bb, H, WC_out)
    hpad_ref[:, 1:H + 1, :] = h3

    # conv2 (3x3, pad=1): same fused-K formulation.
    lhs2 = jnp.concatenate(
        [hpad_ref[:, 0:H, :], h3, hpad_ref[:, 2:H + 2, :]],
        axis=-1).reshape(bb * H, 3 * WC_out).astype(jnp.bfloat16)
    o = jnp.dot(lhs2, m2_ref[...], preferred_element_type=jnp.float32)
    o = o * s2_ref[...] + b2_ref[...]                             # bn2 (f32)

    identity = x.reshape(bb * H, WC_in)      # valid: Cin == Cout, stride == 1
    o = jnp.maximum(o + identity, 0.0)       # residual + relu (f32)
    out_ref[...] = o.reshape(bb, H, WC_out).astype(out_ref.dtype)


def _banded_conv_mat(w, W):
    """w: (Cout, Cin, 3, 3) OIHW conv weight.  Returns M of shape (3*W*Cin, W*Cout)
    with M[(ky*W + xi)*Cin + ci, xo*Cout + co] = w[co, ci, ky, xi - xo + 1]
    (zero when xi - xo + 1 is outside [0,3), which implements padding=1 in x), so
    that in the rows=(b,y) / lanes=(x,c) layout a 3x3 conv is one matmul of the
    lane-concatenated row-shifted input against M (y padding handled by zero rows)."""
    Cout, Cin, KH, KW = w.shape
    kx = jnp.arange(KW)[:, None, None]
    xi = jnp.arange(W)[None, :, None]
    xo = jnp.arange(W)[None, None, :]
    sel = (xi == xo + kx - 1).astype(jnp.float32)          # (KW, W, W) one-hot band
    # M[ky, xi, ci, xo, co] = sum_kx sel[kx, xi, xo] * w[co, ci, ky, kx]
    m = jnp.einsum('kio,CDYk->YiDoC', sel, w.astype(jnp.float32),
                   precision=jax.lax.Precision.HIGHEST)
    return m.reshape(KH * W * Cin, W * Cout)


def basic_block_pallas(x, w1, bn1, w2, bn2, *, eps=1e-5):
    """x: (B, Cin, H, W) NCHW f32.  w1/w2: (Cout, Cin, 3, 3).
    bn1/bn2: dicts with 'gamma','beta','mean','var' of shape (Cout,).
    Returns (out, aux) NCHW; aux aliases out (in-place semantics of the module)."""
    B, Cin, H, W = x.shape
    Cout = w1.shape[0]
    assert Cin == Cout, "downsample=None / stride=1 path requires inplanes == planes"
    WC_in, WC_out = W * Cin, W * Cout

    # NCHW -> rows=(b, y), lanes=(x, c).  Kept in f32 (exact residual add);
    # the kernel casts the conv LHS to bf16 itself.  No wrapper-side padding.
    x_rows = jnp.transpose(x, (0, 2, 3, 1)).reshape(B, H, WC_in).astype(jnp.float32)

    # NOTE: m1/m2 and the folded BN vectors depend only on the parameters; in a
    # multi-call setting build them once and reuse (this script calls once).
    m1 = _banded_conv_mat(w1, W).astype(jnp.bfloat16)      # (3*WC_in,  WC_out)
    m2 = _banded_conv_mat(w2, W).astype(jnp.bfloat16)      # (3*WC_out, WC_out)

    def fold_bn(bn):
        scale = bn['gamma'] / jnp.sqrt(bn['var'] + eps)
        shift = bn['beta'] - bn['mean'] * scale
        # tile per-channel params across x so they match the (x, c) lane layout
        return (jnp.tile(scale, W).reshape(1, WC_out).astype(jnp.float32),
                jnp.tile(shift, W).reshape(1, WC_out).astype(jnp.float32))

    s1, b1 = fold_bn(bn1)
    s2, b2 = fold_bn(bn2)

    # At most 2 grid steps: both v7x TensorCores get a batch block, while on
    # single-TC chips (v5e/v6e) the extra step costs only ~0.35us and the matmul
    # M dimension stays >= B*H/2 (batch folded into rows).
    nb = 2 if (B >= 2 and B % 2 == 0) else 1
    bb = B // nb

    out3d = pl.pallas_call(
        _basic_block_kernel,
        out_shape=jax.ShapeDtypeStruct((B, H, WC_out), jnp.float32),
        grid=(nb,),
        in_specs=[
            pl.BlockSpec((bb, H, WC_in), lambda i: (i, 0, 0)),        # x (f32)
            pl.BlockSpec((3 * WC_in, WC_out), lambda i: (0, 0)),      # conv1 banded (bf16)
            pl.BlockSpec((1, WC_out), lambda i: (0, 0)),              # bn1 scale
            pl.BlockSpec((1, WC_out), lambda i: (0, 0)),              # bn1 shift
            pl.BlockSpec((3 * WC_out, WC_out), lambda i: (0, 0)),     # conv2 banded (bf16)
            pl.BlockSpec((1, WC_out), lambda i: (0, 0)),              # bn2 scale
            pl.BlockSpec((1, WC_out), lambda i: (0, 0)),              # bn2 shift
        ],
        out_specs=pl.BlockSpec((bb, H, WC_out), lambda i: (i, 0, 0)),
        scratch_shapes=[pltpu.VMEM((bb, H + 2, WC_in), jnp.float32),
                        pltpu.VMEM((bb, H + 2, WC_out), jnp.float32)],
        compiler_params=pltpu.CompilerParams(
            dimension_semantics=("parallel",)),
    )(x_rows, m1, s1, b1, m2, s2, b2)

    out = out3d.reshape(B, H, W, Cout).transpose(0, 3, 1, 2)
    # In the PyTorch module `aux = out` aliases the tensor that is then updated
    # in place (`out += identity`; inplace ReLU), so aux == out at return time.
    return out, out


def basic_block_ref(x, w1, bn1, w2, bn2, *, eps=1e-5):
    """Pure-JAX reference mirroring the PyTorch forward (eval-mode BN, c <= 64 path)."""
    def conv(z, w):
        return jax.lax.conv_general_dilated(
            z, w, window_strides=(1, 1), padding=((1, 1), (1, 1)),
            dimension_numbers=('NCHW', 'OIHW', 'NCHW'),
            precision=jax.lax.Precision.HIGHEST)

    def bn(z, p):
        s = p['gamma'] / jnp.sqrt(p['var'] + eps)
        sh = p['beta'] - p['mean'] * s
        return z * s[None, :, None, None] + sh[None, :, None, None]

    out = jax.nn.relu(bn(conv(x, w1), bn1))
    out = bn(conv(out, w2), bn2)
    out = jax.nn.relu(out + x)        # aux aliases out in the torch module
    return out, out


if __name__ == "__main__":
    # Small deterministic config: inplanes = planes = 16 (c <= 64 branch), 16x16 images.
    B, C, H, W = 2, 16, 16, 16
    key = jax.random.PRNGKey(0)
    ks = jax.random.split(key, 5)

    x = jax.random.normal(ks[0], (B, C, H, W), dtype=jnp.float32)
    w1 = jax.random.normal(ks[1], (C, C, 3, 3), dtype=jnp.float32) * 0.1
    w2 = jax.random.normal(ks[2], (C, C, 3, 3), dtype=jnp.float32) * 0.1

    def mk_bn(k):
        k1, k2, k3, k4 = jax.random.split(k, 4)
        return dict(gamma=1.0 + 0.1 * jax.random.normal(k1, (C,), dtype=jnp.float32),
                    beta=0.1 * jax.random.normal(k2, (C,), dtype=jnp.float32),
                    mean=0.1 * jax.random.normal(k3, (C,), dtype=jnp.float32),
                    var=0.5 + jnp.abs(jax.random.normal(k4, (C,), dtype=jnp.float32)))

    bn1 = mk_bn(ks[3])
    bn2 = mk_bn(ks[4])

    # The module's forward receives a tuple (x, _); the second element is unused.
    x_tuple = (x, None)
    out, aux = basic_block_pallas(x_tuple[0], w1, bn1, w2, bn2)
    jax.block_until_ready((out, aux))

    out_ref, aux_ref = basic_block_ref(x, w1, bn1, w2, bn2)
    assert out.shape == (B, C, H, W)
    # bf16 MXU inputs with f32 accumulation vs. an f32 HIGHEST-precision reference:
    # expected elementwise error is O(1e-2) on O(1) activations.
    err = jnp.abs(out - out_ref)
    assert float(err.mean()) < 2e-2, f"mean abs err too large: {float(err.mean())}"
    assert jnp.allclose(out, out_ref, atol=1e-1, rtol=1e-1), \
        f"out mismatch: max abs err {float(err.max())}"
    assert jnp.allclose(aux, out_ref, atol=1e-1, rtol=1e-1), "aux mismatch"

    print("KERNEL_OK")
</pallas_src>

<mosaic_0001>
module attributes {stable_mosaic.version = 11 : i64} {
  func.func @_basic_block_kernel(%arg0: i32, %arg1: memref<1x16x256xf32, #tpu.memory_space<vmem>>, %arg2: memref<768x256xbf16, #tpu.memory_space<vmem>>, %arg3: memref<1x256xf32, #tpu.memory_space<vmem>>, %arg4: memref<1x256xf32, #tpu.memory_space<vmem>>, %arg5: memref<768x256xbf16, #tpu.memory_space<vmem>>, %arg6: memref<1x256xf32, #tpu.memory_space<vmem>>, %arg7: memref<1x256xf32, #tpu.memory_space<vmem>>, %arg8: memref<1x16x256xf32, #tpu.memory_space<vmem>>, %arg9: memref<1x18x256xf32, #tpu.memory_space<vmem>>, %arg10: memref<1x18x256xf32, #tpu.memory_space<vmem>>) attributes {dimension_semantics = [#tpu.dimension_semantics<parallel>], iteration_bounds = array<i64: 2>, scalar_prefetch = 0 : i64, scratch_operands = 2 : i64, tpu.core_type = #tpu.core_type<tc>, window_params = [{transform_indices = @transform_0, window_bounds = array<i64: 1, 16, 256>}, {pipeline_mode = #tpu.pipeline_mode<synchronous>, transform_indices = @transform_1, window_bounds = array<i64: 768, 256>}, {pipeline_mode = #tpu.pipeline_mode<synchronous>, transform_indices = @transform_2, window_bounds = array<i64: 1, 256>}, {pipeline_mode = #tpu.pipeline_mode<synchronous>, transform_indices = @transform_3, window_bounds = array<i64: 1, 256>}, {pipeline_mode = #tpu.pipeline_mode<synchronous>, transform_indices = @transform_4, window_bounds = array<i64: 768, 256>}, {pipeline_mode = #tpu.pipeline_mode<synchronous>, transform_indices = @transform_5, window_bounds = array<i64: 1, 256>}, {pipeline_mode = #tpu.pipeline_mode<synchronous>, transform_indices = @transform_6, window_bounds = array<i64: 1, 256>}, {transform_indices = @transform_7, window_bounds = array<i64: 1, 16, 256>}]} {
    %cst = arith.constant 0.000000e+00 : f32
    %0 = vector.broadcast %cst : f32 to vector<1x1x256xf32>
    %cst_0 = arith.constant 0.000000e+00 : f32
    %1 = vector.broadcast %cst_0 : f32 to vector<1x1x256xf32>
    %c0 = arith.constant 0 : index
    %c0_1 = arith.constant 0 : index
    %c0_2 = arith.constant 0 : index
    %2 = vector.load %arg9[%c0, %c0_1, %c0_2] : memref<1x18x256xf32, #tpu.memory_space<vmem>>, vector<1x1x256xf32>
    tpu.vector_store %arg9[%c0, %c0_1, %c0_2], %0 {strides = array<i32>} : memref<1x18x256xf32, #tpu.memory_space<vmem>>, vector<1x1x256xf32>,
    %c0_3 = arith.constant 0 : index
    %c17 = arith.constant 17 : index
    %c0_4 = arith.constant 0 : index
    %3 = vector.load %arg9[%c0_3, %c17, %c0_4] : memref<1x18x256xf32, #tpu.memory_space<vmem>>, vector<1x1x256xf32>
    tpu.vector_store %arg9[%c0_3, %c17, %c0_4], %0 {strides = array<i32>} : memref<1x18x256xf32, #tpu.memory_space<vmem>>, vector<1x1x256xf32>,
    %c0_5 = arith.constant 0 : index
    %c0_6 = arith.constant 0 : index
    %c0_7 = arith.constant 0 : index
    %4 = vector.load %arg10[%c0_5, %c0_6, %c0_7] : memref<1x18x256xf32, #tpu.memory_space<vmem>>, vector<1x1x256xf32>
    tpu.vector_store %arg10[%c0_5, %c0_6, %c0_7], %1 {strides = array<i32>} : memref<1x18x256xf32, #tpu.memory_space<vmem>>, vector<1x1x256xf32>,
    %c0_8 = arith.constant 0 : index
    %c17_9 = arith.constant 17 : index
    %c0_10 = arith.constant 0 : index
    %5 = vector.load %arg10[%c0_8, %c17_9, %c0_10] : memref<1x18x256xf32, #tpu.memory_space<vmem>>, vector<1x1x256xf32>
    tpu.vector_store %arg10[%c0_8, %c17_9, %c0_10], %1 {strides = array<i32>} : memref<1x18x256xf32, #tpu.memory_space<vmem>>, vector<1x1x256xf32>,
    %c0_11 = arith.constant 0 : index
    %c0_12 = arith.constant 0 : index
    %c0_13 = arith.constant 0 : index
    %6 = vector.load %arg1[%c0_11, %c0_12, %c0_13] : memref<1x16x256xf32, #tpu.memory_space<vmem>>, vector<1x16x256xf32>
    %c0_14 = arith.constant 0 : index
    %c1 = arith.constant 1 : index
    %c0_15 = arith.constant 0 : index
    %7 = vector.load %arg9[%c0_14, %c1, %c0_15] : memref<1x18x256xf32, #tpu.memory_space<vmem>>, vector<1x16x256xf32>
    tpu.vector_store %arg9[%c0_14, %c1, %c0_15], %6 {strides = array<i32>} : memref<1x18x256xf32, #tpu.memory_space<vmem>>, vector<1x16x256xf32>,
    %c0_16 = arith.constant 0 : index
    %c0_17 = arith.constant 0 : index
    %c0_18 = arith.constant 0 : index
    %8 = vector.load %arg9[%c0_16, %c0_17, %c0_18] : memref<1x18x256xf32, #tpu.memory_space<vmem>>, vector<1x16x256xf32>
    %c0_19 = arith.constant 0 : index
    %c2 = arith.constant 2 : index
    %c0_20 = arith.constant 0 : index
    %9 = vector.load %arg9[%c0_19, %c2, %c0_20] : memref<1x18x256xf32, #tpu.memory_space<vmem>>, vector<1x16x256xf32>
    %10 = tpu.concatenate %8, %6, %9 in 2 : vector<1x16x256xf32>, vector<1x16x256xf32>, vector<1x16x256xf32> -> vector<1x16x768xf32>
    %11 = vector.shape_cast %10 : vector<1x16x768xf32> to vector<16x768xf32>
    %12 = arith.truncf %11 : vector<16x768xf32> to vector<16x768xbf16>
    %c0_21 = arith.constant 0 : index
    %c0_22 = arith.constant 0 : index
    %13 = vector.load %arg2[%c0_21, %c0_22] : memref<768x256xbf16, #tpu.memory_space<vmem>>, vector<768x256xbf16>
    %cst_23 = arith.constant dense<0.000000e+00> : vector<16x256xf32>
    %14 = tpu.matmul %12, %13, %cst_23 {dimension_numbers = #tpu.dot_dimension_numbers<[1], [0], [0], [1], [0, 0, 1, 1], [], []>} : vector<16x768xbf16>, vector<768x256xbf16>, vector<16x256xf32> -> vector<16x256xf32>
    %c0_24 = arith.constant 0 : index
    %c0_25 = arith.constant 0 : index
    %15 = vector.load %arg3[%c0_24, %c0_25] : memref<1x256xf32, #tpu.memory_space<vmem>>, vector<1x256xf32>
    %16 = vector.broadcast %15 : vector<1x256xf32> to vector<16x256xf32>
    %17 = arith.mulf %14, %16 : vector<16x256xf32>
    %c0_26 = arith.constant 0 : index
    %c0_27 = arith.constant 0 : index
    %18 = vector.load %arg4[%c0_26, %c0_27] : memref<1x256xf32, #tpu.memory_space<vmem>>, vector<1x256xf32>
    %19 = vector.broadcast %18 : vector<1x256xf32> to vector<16x256xf32>
    %20 = arith.addf %17, %19 : vector<16x256xf32>
    %cst_28 = arith.constant 0.000000e+00 : f32
    %21 = vector.broadcast %cst_28 : f32 to vector<16x256xf32>
    %22 = arith.maximumf %20, %21 : vector<16x256xf32>
    %23 = vector.shape_cast %22 : vector<16x256xf32> to vector<1x16x256xf32>
    %c0_29 = arith.constant 0 : index
    %c1_30 = arith.constant 1 : index
    %c0_31 = arith.constant 0 : index
    %24 = vector.load %arg10[%c0_29, %c1_30, %c0_31] : memref<1x18x256xf32, #tpu.memory_space<vmem>>, vector<1x16x256xf32>
    tpu.vector_store %arg10[%c0_29, %c1_30, %c0_31], %23 {strides = array<i32>} : memref<1x18x256xf32, #tpu.memory_space<vmem>>, vector<1x16x256xf32>,
    %c0_32 = arith.constant 0 : index
    %c0_33 = arith.constant 0 : index
    %c0_34 = arith.constant 0 : index
    %25 = vector.load %arg10[%c0_32, %c0_33, %c0_34] : memref<1x18x256xf32, #tpu.memory_space<vmem>>, vector<1x16x256xf32>
    %c0_35 = arith.constant 0 : index
    %c2_36 = arith.constant 2 : index
    %c0_37 = arith.constant 0 : index
    %26 = vector.load %arg10[%c0_35, %c2_36, %c0_37] : memref<1x18x256xf32, #tpu.memory_space<vmem>>, vector<1x16x256xf32>
    %27 = tpu.concatenate %25, %23, %26 in 2 : vector<1x16x256xf32>, vector<1x16x256xf32>, vector<1x16x256xf32> -> vector<1x16x768xf32>
    %28 = vector.shape_cast %27 : vector<1x16x768xf32> to vector<16x768xf32>
    %29 = arith.truncf %28 : vector<16x768xf32> to vector<16x768xbf16>
    %c0_38 = arith.constant 0 : index
    %c0_39 = arith.constant 0 : index
    %30 = vector.load %arg5[%c0_38, %c0_39] : memref<768x256xbf16, #tpu.memory_space<vmem>>, vector<768x256xbf16>
    %cst_40 = arith.constant dense<0.000000e+00> : vector<16x256xf32>
    %31 = tpu.matmul %29, %30, %cst_40 {dimension_numbers = #tpu.dot_dimension_numbers<[1], [0], [0], [1], [0, 0, 1, 1], [], []>} : vector<16x768xbf16>, vector<768x256xbf16>, vector<16x256xf32> -> vector<16x256xf32>
    %c0_41 = arith.constant 0 : index
    %c0_42 = arith.constant 0 : index
    %32 = vector.load %arg6[%c0_41, %c0_42] : memref<1x256xf32, #tpu.memory_space<vmem>>, vector<1x256xf32>
    %33 = vector.broadcast %32 : vector<1x256xf32> to vector<16x256xf32>
    %34 = arith.mulf %31, %33 : vector<16x256xf32>
    %c0_43 = arith.constant 0 : index
    %c0_44 = arith.constant 0 : index
    %35 = vector.load %arg7[%c0_43, %c0_44] : memref<1x256xf32, #tpu.memory_space<vmem>>, vector<1x256xf32>
    %36 = vector.broadcast %35 : vector<1x256xf32> to vector<16x256xf32>
    %37 = arith.addf %34, %36 : vector<16x256xf32>
    %38 = vector.shape_cast %6 : vector<1x16x256xf32> to vector<16x256xf32>
    %39 = arith.addf %37, %38 : vector<16x256xf32>
    %cst_45 = arith.constant 0.000000e+00 : f32
    %40 = vector.broadcast %cst_45 : f32 to vector<16x256xf32>
    %41 = arith.maximumf %39, %40 : vector<16x256xf32>
    %42 = vector.shape_cast %41 : vector<16x256xf32> to vector<1x16x256xf32>
    %c0_46 = arith.constant 0 : index
    %c0_47 = arith.constant 0 : index
    %c0_48 = arith.constant 0 : index
    %43 = vector.load %arg8[%c0_46, %c0_47, %c0_48] : memref<1x16x256xf32, #tpu.memory_space<vmem>>, vector<1x16x256xf32>
    tpu.vector_store %arg8[%c0_46, %c0_47, %c0_48], %42 {strides = array<i32>} : memref<1x16x256xf32, #tpu.memory_space<vmem>>, vector<1x16x256xf32>,
    return
  }
  func.func @transform_0(%arg0: i32) -> (i32, i32, i32) {
    %c0_i32 = arith.constant 0 : i32
    %c0_i32_0 = arith.constant 0 : i32
    %c0_i32_1 = arith.constant 0 : i32
    return %arg0, %c0_i32, %c0_i32_0 : i32, i32, i32
  }
  func.func @transform_1(%arg0: i32) -> (i32, i32) {
    %c0_i32 = arith.constant 0 : i32
    %c0_i32_0 = arith.constant 0 : i32
    %c0_i32_1 = arith.constant 0 : i32
    return %c0_i32, %c0_i32_0 : i32, i32
  }
  func.func @transform_2(%arg0: i32) -> (i32, i32) {
    %c0_i32 = arith.constant 0 : i32
    %c0_i32_0 = arith.constant 0 : i32
    %c0_i32_1 = arith.constant 0 : i32
    return %c0_i32, %c0_i32_0 : i32, i32
  }
  func.func @transform_3(%arg0: i32) -> (i32, i32) {
    %c0_i32 = arith.constant 0 : i32
    %c0_i32_0 = arith.constant 0 : i32
    %c0_i32_1 = arith.constant 0 : i32
    return %c0_i32, %c0_i32_0 : i32, i32
  }
  func.func @transform_4(%arg0: i32) -> (i32, i32) {
    %c0_i32 = arith.constant 0 : i32
    %c0_i32_0 = arith.constant 0 : i32
    %c0_i32_1 = arith.constant 0 : i32
    return %c0_i32, %c0_i32_0 : i32, i32
  }
  func.func @transform_5(%arg0: i32) -> (i32, i32) {
    %c0_i32 = arith.constant 0 : i32
    %c0_i32_0 = arith.constant 0 : i32
    %c0_i32_1 = arith.constant 0 : i32
    return %c0_i32, %c0_i32_0 : i32, i32
  }
  func.func @transform_6(%arg0: i32) -> (i32, i32) {
    %c0_i32 = arith.constant 0 : i32
    %c0_i32_0 = arith.constant 0 : i32
    %c0_i32_1 = arith.constant 0 : i32
    return %c0_i32, %c0_i32_0 : i32, i32
  }
  func.func @transform_7(%arg0: i32) -> (i32, i32, i32) {
    %c0_i32 = arith.constant 0 : i32
    %c0_i32_0 = arith.constant 0 : i32
    %c0_i32_1 = arith.constant 0 : i32
    return %arg0, %c0_i32, %c0_i32_0 : i32, i32, i32
  }
}

</mosaic_0001>

<llo_original>
// kernel: tpu_custom_call.1
$region0: #{tpu_custom_call.1}
  #allocation0 [shape = 'u32[]', space=smem, size = 0x4, offset = 0x4, fixed_abs, tag = 'smem constant byte address 0x4 - core index']
  #allocation1 [shape = 'u32[72,128]{1,0:T(1,128)}', space=vmem, size = 0x9000, scoped, tag = 'internal scratch']
  #allocation2 [shape = 'f32[1,18,256]{2,1,0:T(8,128)}', space=vmem, size = 0x6000, scoped, tag = 'scratch operand']
  #allocation3 [shape = 'f32[1,18,256]{2,1,0:T(8,128)}', space=vmem, size = 0x6000, scoped, tag = 'scratch operand']
  %s0 = inlined_call_operand.hbm [shape: f32[2,16,256], index: 0, kind: input, shape index: {}]
  %s1 = inlined_call_operand.hbm [shape: bf16[768,256], index: 1, kind: input, shape index: {}]
  %s2 = inlined_call_operand.hbm [shape: f32[1,256], index: 2, kind: input, shape index: {}]
  %s3 = inlined_call_operand.vmem [shape: f32[1,256], index: 3, kind: input, shape index: {}]
  %s4 = inlined_call_operand.hbm [shape: bf16[768,256], index: 4, kind: input, shape index: {}]
  %s5 = inlined_call_operand.vmem [shape: f32[1,256], index: 5, kind: input, shape index: {}]
  %s6 = inlined_call_operand.hbm [shape: f32[1,256], index: 6, kind: input, shape index: {}]
  %s7 = inlined_call_operand.hbm [shape: f32[2,16,256], index: 7, kind: output, shape index: {}]
  %s8 = sld [smem:[#allocation0]]
  $region81: #{tpu_custom_call.1} parent=0
    _
  %s10 = ssub.s32 1, %s8
  %s11 = scalar_select 0, %s10, %s8
  $region1: #{tpu_custom_call.1} parent=0
    #allocation4 [shape = 'u8[32768]{0}', space=vmem, size = 0x8000, scoped, tag = 'input window, operand 0']
    #allocation5 [shape = 's32[2]{0}', space=sflag, size = 0x8, scoped, tag = 'scoped memory for tpu_custom_call.1']
    #allocation6 [shape = 's32[2]{0}', space=sflag, size = 0x8, scoped, tag = 'scoped memory for tpu_custom_call.1']
    #allocation7 [shape = 'u8[393216]{0}', space=vmem, size = 0x60000, scoped, tag = 'input window, operand 1, single buffered']
    #allocation8 [shape = 's32[1]{0}', space=sflag, size = 0x4, scoped, tag = 'scoped memory for tpu_custom_call.1']
    #allocation9 [shape = 'u8[1024]{0}', space=vmem, size = 0x400, scoped, tag = 'input window, operand 2, single buffered']
    #allocation10 [shape = 'u8[393216]{0}', space=vmem, size = 0x60000, scoped, tag = 'input window, operand 4, single buffered']
    #allocation11 [shape = 's32[1]{0}', space=sflag, size = 0x4, scoped, tag = 'scoped memory for tpu_custom_call.1']
    #allocation12 [shape = 'u8[1024]{0}', space=vmem, size = 0x400, scoped, tag = 'input window, operand 6, single buffered']
    #allocation13 [shape = 'u8[32768]{0}', space=vmem, size = 0x8000, scoped, tag = 'output window, operand 0']
    %12 = vsyncpa [#allocation5], 0
    %s13 = scalar_lea.sflag [#allocation5], 1
    %14 = vsyncpa %s13, 0
    %15 = vsyncpa [#allocation8], 0
    %16 = vsyncpa [#allocation11], 0
    %17 = vsyncpa [#allocation6], 0
    %s18 = scalar_lea.sflag [#allocation6], 1
    %19 = vsyncpa %s18, 0
    loop: start=0, step=1, limit=4
    $region2: #{tpu_custom_call.1} parent=1 // loop_pre_header
      _
    $region3: #{tpu_custom_call.1} parent=1 // loop_header
      %s21 = sphi 0, %s25
      %p22 = scmp.ge.s32.totalorder %s21, 4
      %s31 = sphi 0, %s33
      %s34 = sphi 0, %s31
      %s35 = sphi 0, %s34
      %s51 = sphi 0, %s35
      %s55 = sphi 0, %s55
      %s57 = sphi 0, %s55
      %s58 = sphi 0, %s57
      %s72 = sphi 0, %s58
      %s76 = sphi 0, %s76
      %s78 = sphi 0, %s76
      %s79 = sphi 0, %s78
      %s93 = sphi 0, %s79
      %s97 = sphi 0, %s97
      %s99 = sphi 0, %s97
      %s100 = sphi 0, %s99
      %s114 = sphi 0, %s100
      %s118 = sphi 0, %s118
      %s120 = sphi 0, %s118
      %s121 = sphi 0, %s120
      %s135 = sphi 0, %s121
      %s139 = sphi 0, %s139
      %s141 = sphi 0, %s139
      %s142 = sphi 0, %s141
      %s156 = sphi 0, %s142
      %s160 = sphi 0, %s160
      %s162 = sphi 0, %s160
      %s163 = sphi 0, %s162
      %s177 = sphi 0, %s163
      %s183 = sphi 0, %s185
      %s186 = sphi 0, %s183
      %s187 = sphi 0, %s186
      %s203 = sphi 0, %s187
    $region4: #{tpu_custom_call.1} parent=1 // loop_header_branch
      %24 = sbr.rel (%p22) target = $region8
    $region5: #{tpu_custom_call.1} parent=1 // loop_body
      %s26 = ssub.s32 %s21, 1
      %s27 = ssub.s32 %s21, 2
      %s28 = sadd.s32 %s21, 1
      %s29 = ssub.s32 %s21, %s28
      %p30 = scmp.eq.s32.totalorder %s29, 0
      %s32 = sadd.s32 %s31, 1
      %s33 = scalar_select %p30, %s31, %s32
      %p36 = pneg %p30
      %p37 = scmp.eq.s32.totalorder %s21, 1
      %p38 = por %p36, %p37
      %p39 = scmp.ne.s32.totalorder %s31, %s34
      %p40 = scmp.eq.s32.totalorder %s21, 0
      %p41 = por %p39, %p40
      %p42 = scmp.ne.s32.totalorder %s31, %s34
      %p43 = scmp.eq.s32.totalorder %s26, 1
      %p44 = por %p42, %p43
      %p45 = scmp.ne.s32.totalorder %s34, %s35
      %p46 = scmp.eq.s32.totalorder %s26, 0
      %p47 = por %p45, %p46
      %p48 = scmp.ne.s32.totalorder %s34, %s35
      %p49 = scmp.eq.s32.totalorder %s27, 1
      %p50 = por %p48, %p49
      %p52 = scmp.ne.s32.totalorder %s35, %s51
      %p53 = scmp.eq.s32.totalorder %s27, 0
      %p54 = por %p52, %p53
      %s56 = sadd.s32 %s55, 1
      %p59 = scmp.eq.s32.totalorder %s21, 1
      %p60 = scmp.ne.s32.totalorder %s55, %s57
      %p61 = scmp.eq.s32.totalorder %s21, 0
      %p62 = por %p60, %p61
      %p63 = scmp.ne.s32.totalorder %s55, %s57
      %p64 = scmp.eq.s32.totalorder %s26, 1
      %p65 = por %p63, %p64
      %p66 = scmp.ne.s32.totalorder %s57, %s58
      %p67 = scmp.eq.s32.totalorder %s26, 0
      %p68 = por %p66, %p67
      %p69 = scmp.ne.s32.totalorder %s57, %s58
      %p70 = scmp.eq.s32.totalorder %s27, 1
      %p71 = por %p69, %p70
      %p73 = scmp.ne.s32.totalorder %s58, %s72
      %p74 = scmp.eq.s32.totalorder %s27, 0
      %p75 = por %p73, %p74
      %s77 = sadd.s32 %s76, 1
      %p80 = scmp.eq.s32.totalorder %s21, 1
      %p81 = scmp.ne.s32.totalorder %s76, %s78
      %p82 = scmp.eq.s32.totalorder %s21, 0
      %p83 = por %p81, %p82
      %p84 = scmp.ne.s32.totalorder %s76, %s78
      %p85 = scmp.eq.s32.totalorder %s26, 1
      %p86 = por %p84, %p85
      %p87 = scmp.ne.s32.totalorder %s78, %s79
      %p88 = scmp.eq.s32.totalorder %s26, 0
      %p89 = por %p87, %p88
      %p90 = scmp.ne.s32.totalorder %s78, %s79
      %p91 = scmp.eq.s32.totalorder %s27, 1
      %p92 = por %p90, %p91
      %p94 = scmp.ne.s32.totalorder %s79, %s93
      %p95 = scmp.eq.s32.totalorder %s27, 0
      %p96 = por %p94, %p95
      %s98 = sadd.s32 %s97, 1
      %p101 = scmp.eq.s32.totalorder %s21, 1
      %p102 = scmp.ne.s32.totalorder %s97, %s99
      %p103 = scmp.eq.s32.totalorder %s21, 0
      %p104 = por %p102, %p103
      %p105 = scmp.ne.s32.totalorder %s97, %s99
      %p106 = scmp.eq.s32.totalorder %s26, 1
      %p107 = por %p105, %p106
      %p108 = scmp.ne.s32.totalorder %s99, %s100
      %p109 = scmp.eq.s32.totalorder %s26, 0
      %p110 = por %p108, %p109
      %p111 = scmp.ne.s32.totalorder %s99, %s100
      %p112 = scmp.eq.s32.totalorder %s27, 1
      %p113 = por %p111, %p112
      %p115 = scmp.ne.s32.totalorder %s100, %s114
      %p116 = scmp.eq.s32.totalorder %s27, 0
      %p117 = por %p115, %p116
      %s119 = sadd.s32 %s118, 1
      %p122 = scmp.eq.s32.totalorder %s21, 1
      %p123 = scmp.ne.s32.totalorder %s118, %s120
      %p124 = scmp.eq.s32.totalorder %s21, 0
      %p125 = por %p123, %p124
      %p126 = scmp.ne.s32.totalorder %s118, %s120
      %p127 = scmp.eq.s32.totalorder %s26, 1
      %p128 = por %p126, %p127
      %p129 = scmp.ne.s32.totalorder %s120, %s121
      %p130 = scmp.eq.s32.totalorder %s26, 0
      %p131 = por %p129, %p130
      %p132 = scmp.ne.s32.totalorder %s120, %s121
      %p133 = scmp.eq.s32.totalorder %s27, 1
      %p134 = por %p132, %p133
      %p136 = scmp.ne.s32.totalorder %s121, %s135
      %p137 = scmp.eq.s32.totalorder %s27, 0
      %p138 = por %p136, %p137
      %s140 = sadd.s32 %s139, 1
      %p143 = scmp.eq.s32.totalorder %s21, 1
      %p144 = scmp.ne.s32.totalorder %s139, %s141
      %p145 = scmp.eq.s32.totalorder %s21, 0
      %p146 = por %p144, %p145
      %p147 = scmp.ne.s32.totalorder %s139, %s141
      %p148 = scmp.eq.s32.totalorder %s26, 1
      %p149 = por %p147, %p148
      %p150 = scmp.ne.s32.totalorder %s141, %s142
      %p151 = scmp.eq.s32.totalorder %s26, 0
      %p152 = por %p150, %p151
      %p153 = scmp.ne.s32.totalorder %s141, %s142
      %p154 = scmp.eq.s32.totalorder %s27, 1
      %p155 = por %p153, %p154
      %p157 = scmp.ne.s32.totalorder %s142, %s156
      %p158 = scmp.eq.s32.totalorder %s27, 0
      %p159 = por %p157, %p158
      %s161 = sadd.s32 %s160, 1
      %p164 = scmp.eq.s32.totalorder %s21, 1
      %p165 = scmp.ne.s32.totalorder %s160, %s162
      %p166 = scmp.eq.s32.totalorder %s21, 0
      %p167 = por %p165, %p166
      %p168 = scmp.ne.s32.totalorder %s160, %s162
      %p169 = scmp.eq.s32.totalorder %s26, 1
      %p170 = por %p168, %p169
      %p171 = scmp.ne.s32.totalorder %s162, %s163
      %p172 = scmp.eq.s32.totalorder %s26, 0
      %p173 = por %p171, %p172
      %p174 = scmp.ne.s32.totalorder %s162, %s163
      %p175 = scmp.eq.s32.totalorder %s27, 1
      %p176 = por %p174, %p175
      %p178 = scmp.ne.s32.totalorder %s163, %s177
      %p179 = scmp.eq.s32.totalorder %s27, 0
      %p180 = por %p178, %p179
      %s181 = ssub.s32 %s21, %s28
      %p182 = scmp.eq.s32.totalorder %s181, 0
      %s184 = sadd.s32 %s183, 1
      %s185 = scalar_select %p182, %s183, %s184
      %p188 = pneg %p182
      %p189 = scmp.eq.s32.totalorder %s21, 1
      %p190 = por %p188, %p189
      %p191 = scmp.ne.s32.totalorder %s183, %s186
      %p192 = scmp.eq.s32.totalorder %s21, 0
      %p193 = por %p191, %p192
      %p194 = scmp.ne.s32.totalorder %s183, %s186
      %p195 = scmp.eq.s32.totalorder %s26, 1
      %p196 = por %p194, %p195
      %p197 = scmp.ne.s32.totalorder %s186, %s187
      %p198 = scmp.eq.s32.totalorder %s26, 0
      %p199 = por %p197, %p198
      %p200 = scmp.ne.s32.totalorder %s186, %s187
      %p201 = scmp.eq.s32.totalorder %s27, 1
      %p202 = por %p200, %p201
      %p204 = scmp.ne.s32.totalorder %s187, %s203
      %p205 = scmp.eq.s32.totalorder %s27, 0
      %p206 = por %p204, %p205
      %p207 = scmp.le.s32.totalorder 1, %s21
      %p208 = scmp.lt.s32.totalorder %s21, 3
      %p209 = pnand %p207, %p208
      %p210 = pneg %p209
      // Predicated region
      $region9: #{tpu_custom_call.1} parent=5 // pred_check
        _
      $region10: #{tpu_custom_call.1} parent=5 // pred_check_branch
        %212 = sbr.rel (%p209) target = $region12
      $region11: #{tpu_custom_call.1} parent=5 // pred_region
        %s213 = ssub.s32 %s21, 1
        // Predicated region
        $region13: #{tpu_custom_call.1} parent=11 // pred_check
          %p214 = pneg %p68
        $region14: #{tpu_custom_call.1} parent=11 // pred_check_branch
          %216 = sbr.rel (%p214) target = $region16
        $region15: #{tpu_custom_call.1} parent=11 // pred_region
          %218 = vsyncadd [#allocation8], 0
          %s219 = sshll.u32 %s1, 4
          %s220 = int_to_ptr.hbm [resolvable:$true] %s219
          %s221 = sshll.u32 [#allocation7], 4
          %s222 = int_to_ptr.vmem [resolvable:$true] %s221
          %227 = dma.hbm_to_vmem [thread:$0]  %s220, 12288, %s222, [#allocation8], 128, 128, 8
        $region16: #{tpu_custom_call.1} parent=11 // pred_fallthru
          _
        // Predicated region
        $region17: #{tpu_custom_call.1} parent=11 // pred_check
          %p228 = pneg %p89
        $region18: #{tpu_custom_call.1} parent=11 // pred_check_branch
          %230 = sbr.rel (%p228) target = $region20
        $region19: #{tpu_custom_call.1} parent=11 // pred_region
          %232 = vsyncadd [#allocation8], 0
          %s234 = sshll.u32 %s2, 4
          %s235 = int_to_ptr.hbm [resolvable:$true] %s234
          %s236 = sshll.u32 [#allocation9], 4
          %s237 = int_to_ptr.vmem [resolvable:$true] %s236
          %239 = dma.hbm_to_vmem [thread:$0]  %s235, 32, %s237, [#allocation8]
        $region20: #{tpu_custom_call.1} parent=11 // pred_fallthru
          _
        // Predicated region
        $region21: #{tpu_custom_call.1} parent=11 // pred_check
          %p240 = pneg %p110
        $region22: #{tpu_custom_call.1} parent=11 // pred_check_branch
          %242 = sbr.rel (%p240) target = $region24
        $region23: #{tpu_custom_call.1} parent=11 // pred_region
          _
        $region24: #{tpu_custom_call.1} parent=11 // pred_fallthru
          _
        // Predicated region
        $region25: #{tpu_custom_call.1} parent=11 // pred_check
          %p243 = pneg %p131
        $region26: #{tpu_custom_call.1} parent=11 // pred_check_branch
          %245 = sbr.rel (%p243) target = $region28
        $region27: #{tpu_custom_call.1} parent=11 // pred_region
          %247 = vsyncadd [#allocation11], 0
          %s248 = sshll.u32 %s4, 4
          %s249 = int_to_ptr.hbm [resolvable:$true] %s248
          %s250 = sshll.u32 [#allocation10], 4
          %s251 = int_to_ptr.vmem [resolvable:$true] %s250
          %256 = dma.hbm_to_vmem [thread:$0]  %s249, 12288, %s251, [#allocation11], 128, 128, 8
        $region28: #{tpu_custom_call.1} parent=11 // pred_fallthru
          _
        // Predicated region
        $region29: #{tpu_custom_call.1} parent=11 // pred_check
          %p257 = pneg %p152
        $region30: #{tpu_custom_call.1} parent=11 // pred_check_branch
          %259 = sbr.rel (%p257) target = $region32
        $region31: #{tpu_custom_call.1} parent=11 // pred_region
          _
        $region32: #{tpu_custom_call.1} parent=11 // pred_fallthru
          _
        // Predicated region
        $region33: #{tpu_custom_call.1} parent=11 // pred_check
          %p260 = pneg %p173
        $region34: #{tpu_custom_call.1} parent=11 // pred_check_branch
          %262 = sbr.rel (%p260) target = $region36
        $region35: #{tpu_custom_call.1} parent=11 // pred_region
          %264 = vsyncadd [#allocation11], 0
          %s266 = sshll.u32 %s6, 4
          %s267 = int_to_ptr.hbm [resolvable:$true] %s266
          %s268 = sshll.u32 [#allocation12], 4
          %s269 = int_to_ptr.vmem [resolvable:$true] %s268
          %271 = dma.hbm_to_vmem [thread:$0]  %s267, 32, %s269, [#allocation11]
        $region36: #{tpu_custom_call.1} parent=11 // pred_fallthru
          _
      $region12: #{tpu_custom_call.1} parent=5 // pred_fallthru
        _
      %p272 = scmp.lt.s32.totalorder %s21, 2
      // Predicated region
      $region37: #{tpu_custom_call.1} parent=5 // pred_check
        %p273 = pneg %p272
      $region38: #{tpu_custom_call.1} parent=5 // pred_check_branch
        %275 = sbr.rel (%p273) target = $region40
      $region39: #{tpu_custom_call.1} parent=5 // pred_region
        // Predicated region
        $region41: #{tpu_custom_call.1} parent=39 // pred_check
          %p276 = pneg %p41
        $region42: #{tpu_custom_call.1} parent=39 // pred_check_branch
          %278 = sbr.rel (%p276) target = $region44
        $region43: #{tpu_custom_call.1} parent=39 // pred_region
          %s279 = sand.u32 %s31, 1
          %s280 = scalar_lea.sflag [#allocation5], %s279
          %s281 = sand.u32 %s31, 1
          %s282 = smul.addr %s281, 32
          %s283 = scalar_lea.vmem [#allocation4], %s282
          %285 = vsyncadd %s280, 0
          %s286 = smul.addr %s21, 4
          %s287 = smul.addr %s286, 8
          %s288 = scalar_lea.hbm %s0, %s287
          %s289 = sshll.u32 %s288, 4
          %s290 = int_to_ptr.hbm [resolvable:$true] %s289
          %s291 = sshll.u32 %s283, 4
          %s292 = int_to_ptr.vmem [resolvable:$true] %s291
          %297 = dma.hbm_to_vmem [thread:$0]  %s290, 512, %s292, %s280, 256, 256, 16
        $region44: #{tpu_custom_call.1} parent=39 // pred_fallthru
          _
      $region40: #{tpu_custom_call.1} parent=5 // pred_fallthru
        _
      %p298 = scmp.le.s32.totalorder 1, %s21
      %p299 = scmp.lt.s32.totalorder %s21, 3
      %p300 = pnand %p298, %p299
      %p301 = pneg %p300
      // Predicated region
      $region45: #{tpu_custom_call.1} parent=5 // pred_check
        _
      $region46: #{tpu_custom_call.1} parent=5 // pred_check_branch
        %303 = sbr.rel (%p300) target = $region48
      $region47: #{tpu_custom_call.1} parent=5 // pred_region
        %s304 = ssub.s32 %s21, 1
        %s305 = sand.u32 %s34, 1
        %s306 = scalar_lea.sflag [#allocation5], %s305
        %s307 = sand.u32 %s34, 1
        %s308 = smul.addr %s307, 32
        %s309 = scalar_lea.vmem [#allocation4], %s308
        // Predicated region
        $region49: #{tpu_custom_call.1} parent=47 // pred_check
          %p310 = pneg %p47
        $region50: #{tpu_custom_call.1} parent=47 // pred_check_branch
          %312 = sbr.rel (%p310) target = $region52
        $region51: #{tpu_custom_call.1} parent=47 // pred_region
          %314 = dma.done %s306, 512
        $region52: #{tpu_custom_call.1} parent=47 // pred_fallthru
          _
        // Predicated region
        $region53: #{tpu_custom_call.1} parent=47 // pred_check
          %p315 = pneg %p68
        $region54: #{tpu_custom_call.1} parent=47 // pred_check_branch
          %317 = sbr.rel (%p315) target = $region56
        $region55: #{tpu_custom_call.1} parent=47 // pred_region
          %319 = dma.done [#allocation8], 12288
        $region56: #{tpu_custom_call.1} parent=47 // pred_fallthru
          _
        // Predicated region
        $region57: #{tpu_custom_call.1} parent=47 // pred_check
          %p320 = pneg %p89
        $region58: #{tpu_custom_call.1} parent=47 // pred_check_branch
          %322 = sbr.rel (%p320) target = $region60
        $region59: #{tpu_custom_call.1} parent=47 // pred_region
          %324 = dma.done [#allocation8], 32
        $region60: #{tpu_custom_call.1} parent=47 // pred_fallthru
          _
        // Predicated region
        $region61: #{tpu_custom_call.1} parent=47 // pred_check
          %p325 = pneg %p131
        $region62: #{tpu_custom_call.1} parent=47 // pred_check_branch
          %327 = sbr.rel (%p325) target = $region64
        $region63: #{tpu_custom_call.1} parent=47 // pred_region
          %329 = dma.done [#allocation11], 12288
        $region64: #{tpu_custom_call.1} parent=47 // pred_fallthru
          _
        // Predicated region
        $region65: #{tpu_custom_call.1} parent=47 // pred_check
          %p330 = pneg %p173
        $region66: #{tpu_custom_call.1} parent=47 // pred_check_branch
          %332 = sbr.rel (%p330) target = $region68
        $region67: #{tpu_custom_call.1} parent=47 // pred_region
          %334 = dma.done [#allocation11], 32
        $region68: #{tpu_custom_call.1} parent=47 // pred_fallthru
          _
        %s335 = sand.u32 %s34, 1
        %s336 = scalar_lea.sflag [#allocation5], %s335
        %s337 = sand.u32 %s34, 1
        %s338 = smul.addr %s337, 32
        %s339 = scalar_lea.vmem [#allocation4], %s338
        %p340 = pneg %p47
        %p341 = pneg %p44
        %p342 = pneg %p68
        %p343 = pneg %p65
        %p344 = pneg %p89
        %p345 = pneg %p86
        %p346 = pneg %p110
        %p347 = pneg %p107
        %p348 = pneg %p131
        %p349 = pneg %p128
        %p350 = pneg %p152
        %p351 = pneg %p149
        %p352 = pneg %p173
        %p353 = pneg %p170
        %p354 = pneg %p199
        %p355 = pneg %p196
        %s356 = sand.u32 %s186, 1
        %s357 = scalar_lea.sflag [#allocation6], %s356
        %s358 = sand.u32 %s186, 1
        %s359 = smul.addr %s358, 32
        %s360 = scalar_lea.vmem [#allocation13], %s359
        %v361 = vlaneseq
        %vm362 = vcmp.ge.s32.totalorder %v361, 0
        %vm363 = vcmp.lt.s32.totalorder %v361, 256
        %vm364 = vmand %vm362, %vm363
        %365 = vst.msk [vmem:[#allocation2] ss:$8 sm:$0x3] %vm364, 0.0
        %366 = vst.msk [vmem:[#allocation2] ss:$8 sm:$0x0] %vm364, 0.0
        %s367 = scalar_lea.vmem [#allocation2], 33
        %368 = vst.msk [vmem:[%s367] ss:$8 sm:$0x3] %vm364, 0.0
        %369 = vst.msk [vmem:[%s367] ss:$8 sm:$0x0] %vm364, 0.0
        %370 = vst.msk [vmem:[#allocation3] ss:$8 sm:$0x3] %vm364, 0.0
        %371 = vst.msk [vmem:[#allocation3] ss:$8 sm:$0x0] %vm364, 0.0
        %s372 = scalar_lea.vmem [#allocation3], 33
        %373 = vst.msk [vmem:[%s372] ss:$8 sm:$0x3] %vm364, 0.0
        %374 = vst.msk [vmem:[%s372] ss:$8 sm:$0x0] %vm364, 0.0
        %v375 = vld [vmem:[%s309] sm:$0xff]
        %v376 = vld [vmem:[%s309 + $0x8] sm:$0xff]
        %v377 = vld [vmem:[%s309 + $0x10] sm:$0xff]
        %v378 = vld [vmem:[%s309 + $0x18] sm:$0xff]
        %vm383 = vcmask 1040384
        %v384 = vrot.slane %v375, 7
        %v385 = vrot.slane %v376, 7
        %v386 = vrot.slane %v377, 7
        %v387 = vsel %vm383, %v384, %v386
        %v388 = vrot.slane %v378, 7
        %v389 = vsel %vm383, %v385, %v388
        %396 = vst [vmem:[#allocation2] sm:$0xfe] %v384
        %397 = vst [vmem:[#allocation2 + $0x8] sm:$0xfe] %v385
        %398 = vst [vmem:[#allocation2 + $0x10] sm:$0xff] %v387
        %399 = vst [vmem:[#allocation2 + $0x18] sm:$0xff] %v389
        %400 = vst [vmem:[#allocation2 + $0x20] sm:$0x1] %v386
        %401 = vst [vmem:[#allocation2 + $0x28] sm:$0x1] %v388
        %v402 = vld [vmem:[#allocation2] sm:$0xff]
        %v403 = vld [vmem:[#allocation2 + $0x8] sm:$0xff]
        %v404 = vld [vmem:[#allocation2 + $0x10] sm:$0xff]
        %v405 = vld [vmem:[#allocation2 + $0x18] sm:$0xff]
        %v406 = vld [vmem:[#allocation2] sm:$0xfc]
        %v407 = vld [vmem:[#allocation2 + $0x8] sm:$0xfc]
        %v408 = vld [vmem:[#allocation2 + $0x20] sm:$0x3]
        %v409 = vld [vmem:[#allocation2 + $0x28] sm:$0x3]
        %vm416 = vcmask 1045504
        %v417 = vrot.slane %v406, 2
        %v418 = vrot.slane %v404, 2
        %v419 = vsel %vm416, %v417, %v418
        %v420 = vrot.slane %v407, 2
        %v421 = vrot.slane %v405, 2
        %v422 = vsel %vm416, %v420, %v421
        %v423 = vrot.slane %v408, 2
        %v424 = vsel %vm416, %v418, %v423
        %v425 = vrot.slane %v409, 2
        %v426 = vsel %vm416, %v421, %v425
        %v431 = vpack.c.bf16 %v404, %v402
        %v432 = vpack.c.bf16 %v405, %v403
        %v433 = vpack.c.bf16 %v377, %v375
        %v434 = vpack.c.bf16 %v378, %v376
        %v435 = vpack.c.bf16 %v424, %v419
        %v436 = vpack.c.bf16 %v426, %v422
        %v437 = vld [vmem:[#allocation7] sm:$0xff]
        %v438 = vld [vmem:[#allocation7 + $0x8] sm:$0xff]
        %v439 = vld [vmem:[#allocation7 + $0x10] sm:$0xff]
        %v440 = vld [vmem:[#allocation7 + $0x18] sm:$0xff]
        %v441 = vld [vmem:[#allocation7 + $0x20] sm:$0xff]
        %v442 = vld [vmem:[#allocation7 + $0x28] sm:$0xff]
        %v443 = vld [vmem:[#allocation7 + $0x30] sm:$0xff]
        %v444 = vld [vmem:[#allocation7 + $0x38] sm:$0xff]
        %v445 = vld [vmem:[#allocation7 + $0x40] sm:$0xff]
        %v446 = vld [vmem:[#allocation7 + $0x48] sm:$0xff]
        %v447 = vld [vmem:[#allocation7 + $0x50] sm:$0xff]
        %v448 = vld [vmem:[#allocation7 + $0x58] sm:$0xff]
        %v449 = vld [vmem:[#allocation7 + $0x60] sm:$0xff]
        %v450 = vld [vmem:[#allocation7 + $0x68] sm:$0xff]
        %v451 = vld [vmem:[#allocation7 + $0x70] sm:$0xff]
        %v452 = vld [vmem:[#allocation7 + $0x78] sm:$0xff]
        %v453 = vld [vmem:[#allocation7 + $0x80] sm:$0xff]
        %v454 = vld [vmem:[#allocation7 + $0x88] sm:$0xff]
        %v455 = vld [vmem:[#allocation7 + $0x90] sm:$0xff]
        %v456 = vld [vmem:[#allocation7 + $0x98] sm:$0xff]
        %v457 = vld [vmem:[#allocation7 + $0xa0] sm:$0xff]
        %v458 = vld [vmem:[#allocation7 + $0xa8] sm:$0xff]
        %v459 = vld [vmem:[#allocation7 + $0xb0] sm:$0xff]
        %v460 = vld [vmem:[#allocation7 + $0xb8] sm:$0xff]
        %v461 = vld [vmem:[#allocation7 + $0xc0] sm:$0xff]
        %v462 = vld [vmem:[#allocation7 + $0xc8] sm:$0xff]
        %v463 = vld [vmem:[#allocation7 + $0xd0] sm:$0xff]
        %v464 = vld [vmem:[#allocation7 + $0xd8] sm:$0xff]
        %v465 = vld [vmem:[#allocation7 + $0xe0] sm:$0xff]
        %v466 = vld [vmem:[#allocation7 + $0xe8] sm:$0xff]
        %v467 = vld [vmem:[#allocation7 + $0xf0] sm:$0xff]
        %v468 = vld [vmem:[#allocation7 + $0xf8] sm:$0xff]
        %v469 = vld [vmem:[#allocation7 + $0x100] sm:$0xff]
        %v470 = vld [vmem:[#allocation7 + $0x108] sm:$0xff]
        %v471 = vld [vmem:[#allocation7 + $0x110] sm:$0xff]
        %v472 = vld [vmem:[#allocation7 + $0x118] sm:$0xff]
        %v473 = vld [vmem:[#allocation7 + $0x120] sm:$0xff]
        %v474 = vld [vmem:[#allocation7 + $0x128] sm:$0xff]
        %v475 = vld [vmem:[#allocation7 + $0x130] sm:$0xff]
        %v476 = vld [vmem:[#allocation7 + $0x138] sm:$0xff]
        %v477 = vld [vmem:[#allocation7 + $0x140] sm:$0xff]
        %v478 = vld [vmem:[#allocation7 + $0x148] sm:$0xff]
        %v479 = vld [vmem:[#allocation7 + $0x150] sm:$0xff]
        %v480 = vld [vmem:[#allocation7 + $0x158] sm:$0xff]
        %v481 = vld [vmem:[#allocation7 + $0x160] sm:$0xff]
        %v482 = vld [vmem:[#allocation7 + $0x168] sm:$0xff]
        %v483 = vld [vmem:[#allocation7 + $0x170] sm:$0xff]
        %v484 = vld [vmem:[#allocation7 + $0x178] sm:$0xff]
        %v485 = vld [vmem:[#allocation7 + $0x180] sm:$0xff]
        %v486 = vld [vmem:[#allocation7 + $0x188] sm:$0xff]
        %v487 = vld [vmem:[#allocation7 + $0x190] sm:$0xff]
        %v488 = vld [vmem:[#allocation7 + $0x198] sm:$0xff]
        %v489 = vld [vmem:[#allocation7 + $0x1a0] sm:$0xff]
        %v490 = vld [vmem:[#allocation7 + $0x1a8] sm:$0xff]
        %v491 = vld [vmem:[#allocation7 + $0x1b0] sm:$0xff]
        %v492 = vld [vmem:[#allocation7 + $0x1b8] sm:$0xff]
        %v493 = vld [vmem:[#allocation7 + $0x1c0] sm:$0xff]
        %v494 = vld [vmem:[#allocation7 + $0x1c8] sm:$0xff]
        %v495 = vld [vmem:[#allocation7 + $0x1d0] sm:$0xff]
        %v496 = vld [vmem:[#allocation7 + $0x1d8] sm:$0xff]
        %v497 = vld [vmem:[#allocation7 + $0x1e0] sm:$0xff]
        %v498 = vld [vmem:[#allocation7 + $0x1e8] sm:$0xff]
        %v499 = vld [vmem:[#allocation7 + $0x1f0] sm:$0xff]
        %v500 = vld [vmem:[#allocation7 + $0x1f8] sm:$0xff]
        %v501 = vld [vmem:[#allocation7 + $0x200] sm:$0xff]
        %v502 = vld [vmem:[#allocation7 + $0x208] sm:$0xff]
        %v503 = vld [vmem:[#allocation7 + $0x210] sm:$0xff]
        %v504 = vld [vmem:[#allocation7 + $0x218] sm:$0xff]
        %v505 = vld [vmem:[#allocation7 + $0x220] sm:$0xff]
        %v506 = vld [vmem:[#allocation7 + $0x228] sm:$0xff]
        %v507 = vld [vmem:[#allocation7 + $0x230] sm:$0xff]
        %v508 = vld [vmem:[#allocation7 + $0x238] sm:$0xff]
        %v509 = vld [vmem:[#allocation7 + $0x240] sm:$0xff]
        %v510 = vld [vmem:[#allocation7 + $0x248] sm:$0xff]
        %v511 = vld [vmem:[#allocation7 + $0x250] sm:$0xff]
        %v512 = vld [vmem:[#allocation7 + $0x258] sm:$0xff]
        %v513 = vld [vmem:[#allocation7 + $0x260] sm:$0xff]
        %v514 = vld [vmem:[#allocation7 + $0x268] sm:$0xff]
        %v515 = vld [vmem:[#allocation7 + $0x270] sm:$0xff]
        %v516 = vld [vmem:[#allocation7 + $0x278] sm:$0xff]
        %v517 = vld [vmem:[#allocation7 + $0x280] sm:$0xff]
        %v518 = vld [vmem:[#allocation7 + $0x288] sm:$0xff]
        %v519 = vld [vmem:[#allocation7 + $0x290] sm:$0xff]
        %v520 = vld [vmem:[#allocation7 + $0x298] sm:$0xff]
        %v521 = vld [vmem:[#allocation7 + $0x2a0] sm:$0xff]
        %v522 = vld [vmem:[#allocation7 + $0x2a8] sm:$0xff]
        %v523 = vld [vmem:[#allocation7 + $0x2b0] sm:$0xff]
        %v524 = vld [vmem:[#allocation7 + $0x2b8] sm:$0xff]
        %v525 = vld [vmem:[#allocation7 + $0x2c0] sm:$0xff]
        %v526 = vld [vmem:[#allocation7 + $0x2c8] sm:$0xff]
        %v527 = vld [vmem:[#allocation7 + $0x2d0] sm:$0xff]
        %v528 = vld [vmem:[#allocation7 + $0x2d8] sm:$0xff]
        %v529 = vld [vmem:[#allocation7 + $0x2e0] sm:$0xff]
        %v530 = vld [vmem:[#allocation7 + $0x2e8] sm:$0xff]
        %v531 = vld [vmem:[#allocation7 + $0x2f0] sm:$0xff]
        %v532 = vld [vmem:[#allocation7 + $0x2f8] sm:$0xff]
        %v629 = vunpack.c.l.b16 %v437
        %v630 = vunpack.c.h.b16 %v437
        %v631 = vunpack.c.l.b16 %v438
        %v632 = vunpack.c.h.b16 %v438
        %v633 = vunpack.c.l.b16 %v439
        %v634 = vunpack.c.h.b16 %v439
        %v635 = vunpack.c.l.b16 %v440
        %v636 = vunpack.c.h.b16 %v440
        %v637 = vunpack.c.l.b16 %v441
        %v638 = vunpack.c.h.b16 %v441
        %v639 = vunpack.c.l.b16 %v442
        %v640 = vunpack.c.h.b16 %v442
        %v641 = vunpack.c.l.b16 %v443
        %v642 = vunpack.c.h.b16 %v443
        %v643 = vunpack.c.l.b16 %v444
        %v644 = vunpack.c.h.b16 %v444
        %v645 = vunpack.c.l.b16 %v445
        %v646 = vunpack.c.h.b16 %v445
        %v647 = vunpack.c.l.b16 %v446
        %v648 = vunpack.c.h.b16 %v446
        %v649 = vunpack.c.l.b16 %v447
        %v650 = vunpack.c.h.b16 %v447
        %v651 = vunpack.c.l.b16 %v448
        %v652 = vunpack.c.h.b16 %v448
        %v653 = vunpack.c.l.b16 %v449
        %v654 = vunpack.c.h.b16 %v449
        %v655 = vunpack.c.l.b16 %v450
        %v656 = vunpack.c.h.b16 %v450
        %v657 = vunpack.c.l.b16 %v451
        %v658 = vunpack.c.h.b16 %v451
        %v659 = vunpack.c.l.b16 %v452
        %v660 = vunpack.c.h.b16 %v452
        %v661 = vunpack.c.l.b16 %v453
        %v662 = vunpack.c.h.b16 %v453
        %v663 = vunpack.c.l.b16 %v454
        %v664 = vunpack.c.h.b16 %v454
        %v665 = vunpack.c.l.b16 %v455
        %v666 = vunpack.c.h.b16 %v455
        %v667 = vunpack.c.l.b16 %v456
        %v668 = vunpack.c.h.b16 %v456
        %v669 = vunpack.c.l.b16 %v457
        %v670 = vunpack.c.h.b16 %v457
        %v671 = vunpack.c.l.b16 %v458
        %v672 = vunpack.c.h.b16 %v458
        %v673 = vunpack.c.l.b16 %v459
        %v674 = vunpack.c.h.b16 %v459
        %v675 = vunpack.c.l.b16 %v460
        %v676 = vunpack.c.h.b16 %v460
        %v677 = vunpack.c.l.b16 %v461
        %v678 = vunpack.c.h.b16 %v461
        %v679 = vunpack.c.l.b16 %v462
        %v680 = vunpack.c.h.b16 %v462
        %v681 = vunpack.c.l.b16 %v463
        %v682 = vunpack.c.h.b16 %v463
        %v683 = vunpack.c.l.b16 %v464
        %v684 = vunpack.c.h.b16 %v464
        %v685 = vunpack.c.l.b16 %v465
        %v686 = vunpack.c.h.b16 %v465
        %v687 = vunpack.c.l.b16 %v466
        %v688 = vunpack.c.h.b16 %v466
        %v689 = vunpack.c.l.b16 %v467
        %v690 = vunpack.c.h.b16 %v467
        %v691 = vunpack.c.l.b16 %v468
        %v692 = vunpack.c.h.b16 %v468
        %v693 = vunpack.c.l.b16 %v469
        %v694 = vunpack.c.h.b16 %v469
        %v695 = vunpack.c.l.b16 %v470
        %v696 = vunpack.c.h.b16 %v470
        %v697 = vunpack.c.l.b16 %v471
        %v698 = vunpack.c.h.b16 %v471
        %v699 = vunpack.c.l.b16 %v472
        %v700 = vunpack.c.h.b16 %v472
        %v701 = vunpack.c.l.b16 %v473
        %v702 = vunpack.c.h.b16 %v473
        %v703 = vunpack.c.l.b16 %v474
        %v704 = vunpack.c.h.b16 %v474
        %v705 = vunpack.c.l.b16 %v475
        %v706 = vunpack.c.h.b16 %v475
        %v707 = vunpack.c.l.b16 %v476
        %v708 = vunpack.c.h.b16 %v476
        %v709 = vunpack.c.l.b16 %v477
        %v710 = vunpack.c.h.b16 %v477
        %v711 = vunpack.c.l.b16 %v478
        %v712 = vunpack.c.h.b16 %v478
        %v713 = vunpack.c.l.b16 %v479
        %v714 = vunpack.c.h.b16 %v479
        %v715 = vunpack.c.l.b16 %v480
        %v716 = vunpack.c.h.b16 %v480
        %v717 = vunpack.c.l.b16 %v481
        %v718 = vunpack.c.h.b16 %v481
        %v719 = vunpack.c.l.b16 %v482
        %v720 = vunpack.c.h.b16 %v482
        %v721 = vunpack.c.l.b16 %v483
        %v722 = vunpack.c.h.b16 %v483
        %v723 = vunpack.c.l.b16 %v484
        %v724 = vunpack.c.h.b16 %v484
        %v725 = vunpack.c.l.b16 %v485
        %v726 = vunpack.c.h.b16 %v485
        %v727 = vunpack.c.l.b16 %v486
        %v728 = vunpack.c.h.b16 %v486
        %v729 = vunpack.c.l.b16 %v487
        %v730 = vunpack.c.h.b16 %v487
        %v731 = vunpack.c.l.b16 %v488
        %v732 = vunpack.c.h.b16 %v488
        %v733 = vunpack.c.l.b16 %v489
        %v734 = vunpack.c.h.b16 %v489
        %v735 = vunpack.c.l.b16 %v490
        %v736 = vunpack.c.h.b16 %v490
        %v737 = vunpack.c.l.b16 %v491
        %v738 = vunpack.c.h.b16 %v491
        %v739 = vunpack.c.l.b16 %v492
        %v740 = vunpack.c.h.b16 %v492
        %v741 = vunpack.c.l.b16 %v493
        %v742 = vunpack.c.h.b16 %v493
        %v743 = vunpack.c.l.b16 %v494
        %v744 = vunpack.c.h.b16 %v494
        %v745 = vunpack.c.l.b16 %v495
        %v746 = vunpack.c.h.b16 %v495
        %v747 = vunpack.c.l.b16 %v496
        %v748 = vunpack.c.h.b16 %v496
        %v749 = vunpack.c.l.b16 %v497
        %v750 = vunpack.c.h.b16 %v497
        %v751 = vunpack.c.l.b16 %v498
        %v752 = vunpack.c.h.b16 %v498
        %v753 = vunpack.c.l.b16 %v499
        %v754 = vunpack.c.h.b16 %v499
        %v755 = vunpack.c.l.b16 %v500
        %v756 = vunpack.c.h.b16 %v500
        %v757 = vunpack.c.l.b16 %v501
        %v758 = vunpack.c.h.b16 %v501
        %v759 = vunpack.c.l.b16 %v502
        %v760 = vunpack.c.h.b16 %v502
        %v761 = vunpack.c.l.b16 %v503
        %v762 = vunpack.c.h.b16 %v503
        %v763 = vunpack.c.l.b16 %v504
        %v764 = vunpack.c.h.b16 %v504
        %v765 = vunpack.c.l.b16 %v505
        %v766 = vunpack.c.h.b16 %v505
        %v767 = vunpack.c.l.b16 %v506
        %v768 = vunpack.c.h.b16 %v506
        %v769 = vunpack.c.l.b16 %v507
        %v770 = vunpack.c.h.b16 %v507
        %v771 = vunpack.c.l.b16 %v508
        %v772 = vunpack.c.h.b16 %v508
        %v773 = vunpack.c.l.b16 %v509
        %v774 = vunpack.c.h.b16 %v509
        %v775 = vunpack.c.l.b16 %v510
        %v776 = vunpack.c.h.b16 %v510
        %v777 = vunpack.c.l.b16 %v511
        %v778 = vunpack.c.h.b16 %v511
        %v779 = vunpack.c.l.b16 %v512
        %v780 = vunpack.c.h.b16 %v512
        %v781 = vunpack.c.l.b16 %v513
        %v782 = vunpack.c.h.b16 %v513
        %v783 = vunpack.c.l.b16 %v514
        %v784 = vunpack.c.h.b16 %v514
        %v785 = vunpack.c.l.b16 %v515
        %v786 = vunpack.c.h.b16 %v515
        %v787 = vunpack.c.l.b16 %v516
        %v788 = vunpack.c.h.b16 %v516
        %v789 = vunpack.c.l.b16 %v517
        %v790 = vunpack.c.h.b16 %v517
        %v791 = vunpack.c.l.b16 %v518
        %v792 = vunpack.c.h.b16 %v518
        %v793 = vunpack.c.l.b16 %v519
        %v794 = vunpack.c.h.b16 %v519
        %v795 = vunpack.c.l.b16 %v520
        %v796 = vunpack.c.h.b16 %v520
        %v797 = vunpack.c.l.b16 %v521
        %v798 = vunpack.c.h.b16 %v521
        %v799 = vunpack.c.l.b16 %v522
        %v800 = vunpack.c.h.b16 %v522
        %v801 = vunpack.c.l.b16 %v523
        %v802 = vunpack.c.h.b16 %v523
        %v803 = vunpack.c.l.b16 %v524
        %v804 = vunpack.c.h.b16 %v524
        %v805 = vunpack.c.l.b16 %v525
        %v806 = vunpack.c.h.b16 %v525
        %v807 = vunpack.c.l.b16 %v526
        %v808 = vunpack.c.h.b16 %v526
        %v809 = vunpack.c.l.b16 %v527
        %v810 = vunpack.c.h.b16 %v527
        %v811 = vunpack.c.l.b16 %v528
        %v812 = vunpack.c.h.b16 %v528
        %v813 = vunpack.c.l.b16 %v529
        %v814 = vunpack.c.h.b16 %v529
        %v815 = vunpack.c.l.b16 %v530
        %v816 = vunpack.c.h.b16 %v530
        %v817 = vunpack.c.l.b16 %v531
        %v818 = vunpack.c.h.b16 %v531
        %v819 = vunpack.c.l.b16 %v532
        %v820 = vunpack.c.h.b16 %v532
        %v821 = vpack.c.b16 %v631, %v629
        %v822 = vpack.c.b16 %v632, %v630
        %v823 = vpack.c.b16 %v635, %v633
        %v824 = vpack.c.b16 %v636, %v634
        %v825 = vpack.c.b16 %v639, %v637
        %v826 = vpack.c.b16 %v640, %v638
        %v827 = vpack.c.b16 %v643, %v641
        %v828 = vpack.c.b16 %v644, %v642
        %v829 = vpack.c.b16 %v647, %v645
        %v830 = vpack.c.b16 %v648, %v646
        %v831 = vpack.c.b16 %v651, %v649
        %v832 = vpack.c.b16 %v652, %v650
        %v833 = vpack.c.b16 %v655, %v653
        %v834 = vpack.c.b16 %v656, %v654
        %v835 = vpack.c.b16 %v659, %v657
        %v836 = vpack.c.b16 %v660, %v658
        %v837 = vpack.c.b16 %v663, %v661
        %v838 = vpack.c.b16 %v664, %v662
        %v839 = vpack.c.b16 %v667, %v665
        %v840 = vpack.c.b16 %v668, %v666
        %v841 = vpack.c.b16 %v671, %v669
        %v842 = vpack.c.b16 %v672, %v670
        %v843 = vpack.c.b16 %v675, %v673
        %v844 = vpack.c.b16 %v676, %v674
        %v845 = vpack.c.b16 %v679, %v677
        %v846 = vpack.c.b16 %v680, %v678
        %v847 = vpack.c.b16 %v683, %v681
        %v848 = vpack.c.b16 %v684, %v682
        %v849 = vpack.c.b16 %v687, %v685
        %v850 = vpack.c.b16 %v688, %v686
        %v851 = vpack.c.b16 %v691, %v689
        %v852 = vpack.c.b16 %v692, %v690
        %v853 = vpack.c.b16 %v695, %v693
        %v854 = vpack.c.b16 %v696, %v694
        %v855 = vpack.c.b16 %v699, %v697
        %v856 = vpack.c.b16 %v700, %v698
        %v857 = vpack.c.b16 %v703, %v701
        %v858 = vpack.c.b16 %v704, %v702
        %v859 = vpack.c.b16 %v707, %v705
        %v860 = vpack.c.b16 %v708, %v706
        %v861 = vpack.c.b16 %v711, %v709
        %v862 = vpack.c.b16 %v712, %v710
        %v863 = vpack.c.b16 %v715, %v713
        %v864 = vpack.c.b16 %v716, %v714
        %v865 = vpack.c.b16 %v719, %v717
        %v866 = vpack.c.b16 %v720, %v718
        %v867 = vpack.c.b16 %v723, %v721
        %v868 = vpack.c.b16 %v724, %v722
        %v869 = vpack.c.b16 %v727, %v725
        %v870 = vpack.c.b16 %v728, %v726
        %v871 = vpack.c.b16 %v731, %v729
        %v872 = vpack.c.b16 %v732, %v730
        %v873 = vpack.c.b16 %v735, %v733
        %v874 = vpack.c.b16 %v736, %v734
        %v875 = vpack.c.b16 %v739, %v737
        %v876 = vpack.c.b16 %v740, %v738
        %v877 = vpack.c.b16 %v743, %v741
        %v878 = vpack.c.b16 %v744, %v742
        %v879 = vpack.c.b16 %v747, %v745
        %v880 = vpack.c.b16 %v748, %v746
        %v881 = vpack.c.b16 %v751, %v749
        %v882 = vpack.c.b16 %v752, %v750
        %v883 = vpack.c.b16 %v755, %v753
        %v884 = vpack.c.b16 %v756, %v754
        %v885 = vpack.c.b16 %v759, %v757
        %v886 = vpack.c.b16 %v760, %v758
        %v887 = vpack.c.b16 %v763, %v761
        %v888 = vpack.c.b16 %v764, %v762
        %v889 = vpack.c.b16 %v767, %v765
        %v890 = vpack.c.b16 %v768, %v766
        %v891 = vpack.c.b16 %v771, %v769
        %v892 = vpack.c.b16 %v772, %v770
        %v893 = vpack.c.b16 %v775, %v773
        %v894 = vpack.c.b16 %v776, %v774
        %v895 = vpack.c.b16 %v779, %v777
        %v896 = vpack.c.b16 %v780, %v778
        %v897 = vpack.c.b16 %v783, %v781
        %v898 = vpack.c.b16 %v784, %v782
        %v899 = vpack.c.b16 %v787, %v785
        %v900 = vpack.c.b16 %v788, %v786
        %v901 = vpack.c.b16 %v791, %v789
        %v902 = vpack.c.b16 %v792, %v790
        %v903 = vpack.c.b16 %v795, %v793
        %v904 = vpack.c.b16 %v796, %v794
        %v905 = vpack.c.b16 %v799, %v797
        %v906 = vpack.c.b16 %v800, %v798
        %v907 = vpack.c.b16 %v803, %v801
        %v908 = vpack.c.b16 %v804, %v802
        %v909 = vpack.c.b16 %v807, %v805
        %v910 = vpack.c.b16 %v808, %v806
        %v911 = vpack.c.b16 %v811, %v809
        %v912 = vpack.c.b16 %v812, %v810
        %v913 = vpack.c.b16 %v815, %v813
        %v914 = vpack.c.b16 %v816, %v814
        %v915 = vpack.c.b16 %v819, %v817
        %v916 = vpack.c.b16 %v820, %v818
        %1013 = vmatpush.bf16.msra.mxu0 %v835
        %1014 = vmatpush.bf16.msra.mxu0 %v833
        %1015 = vmatpush.bf16.msra.mxu0 %v831
        %1016 = vmatpush.bf16.msra.mxu0 %v829
        %1017 = vmatpush.bf16.msra.mxu0 %v827
        %1018 = vmatpush.bf16.msra.mxu0 %v825
        %1019 = vmatpush.bf16.msra.mxu0 %v823
        %1020 = vmatpush.bf16.msra.mxu0 %v821
        %1021 = vmatmul.bf16.gmra.mxu0 %v431
        %v1022 = vpop.f32.mrf.mxu0
        %v1023 = vadd.f32 0.0, %v1022
        %v1024 = vpop.f32.mrf.mxu0
        %v1025 = vadd.f32 0.0, %v1024
        %1026 = vdwg.mxu0
        %1027 = vmatpush.bf16.msra.mxu0 %v851
        %1028 = vmatpush.bf16.msra.mxu0 %v849
        %1029 = vmatpush.bf16.msra.mxu0 %v847
        %1030 = vmatpush.bf16.msra.mxu0 %v845
        %1031 = vmatpush.bf16.msra.mxu0 %v843
        %1032 = vmatpush.bf16.msra.mxu0 %v841
        %1033 = vmatpush.bf16.msra.mxu0 %v839
        %1034 = vmatpush.bf16.msra.mxu0 %v837
        %1035 = vmatmul.bf16.gmra.mxu0 %v432
        %v1036 = vpop.f32.mrf.mxu0
        %v1037 = vadd.f32 %v1023, %v1036
        %v1038 = vpop.f32.mrf.mxu0
        %v1039 = vadd.f32 %v1025, %v1038
        %1040 = vdwg.mxu0
        %1041 = vmatpush.bf16.msra.mxu0 %v867
        %1042 = vmatpush.bf16.msra.mxu0 %v865
        %1043 = vmatpush.bf16.msra.mxu0 %v863
        %1044 = vmatpush.bf16.msra.mxu0 %v861
        %1045 = vmatpush.bf16.msra.mxu0 %v859
        %1046 = vmatpush.bf16.msra.mxu0 %v857
        %1047 = vmatpush.bf16.msra.mxu0 %v855
        %1048 = vmatpush.bf16.msra.mxu0 %v853
        %1049 = vmatmul.bf16.gmra.mxu0 %v433
        %v1050 = vpop.f32.mrf.mxu0
        %v1051 = vadd.f32 %v1037, %v1050
        %v1052 = vpop.f32.mrf.mxu0
        %v1053 = vadd.f32 %v1039, %v1052
        %1054 = vdwg.mxu0
        %1055 = vmatpush.bf16.msra.mxu0 %v883
        %1056 = vmatpush.bf16.msra.mxu0 %v881
        %1057 = vmatpush.bf16.msra.mxu0 %v879
        %1058 = vmatpush.bf16.msra.mxu0 %v877
        %1059 = vmatpush.bf16.msra.mxu0 %v875
        %1060 = vmatpush.bf16.msra.mxu0 %v873
        %1061 = vmatpush.bf16.msra.mxu0 %v871
        %1062 = vmatpush.bf16.msra.mxu0 %v869
        %1063 = vmatmul.bf16.gmra.mxu0 %v434
        %v1064 = vpop.f32.mrf.mxu0
        %v1065 = vadd.f32 %v1051, %v1064
        %v1066 = vpop.f32.mrf.mxu0
        %v1067 = vadd.f32 %v1053, %v1066
        %1068 = vdwg.mxu0
        %1069 = vmatpush.bf16.msra.mxu0 %v899
        %1070 = vmatpush.bf16.msra.mxu0 %v897
        %1071 = vmatpush.bf16.msra.mxu0 %v895
        %1072 = vmatpush.bf16.msra.mxu0 %v893
        %1073 = vmatpush.bf16.msra.mxu0 %v891
        %1074 = vmatpush.bf16.msra.mxu0 %v889
        %1075 = vmatpush.bf16.msra.mxu0 %v887
        %1076 = vmatpush.bf16.msra.mxu0 %v885
        %1077 = vmatmul.bf16.gmra.mxu0 %v435
        %v1078 = vpop.f32.mrf.mxu0
        %v1079 = vadd.f32 %v1065, %v1078
        %v1080 = vpop.f32.mrf.mxu0
        %v1081 = vadd.f32 %v1067, %v1080
        %1082 = vdwg.mxu0
        %1083 = vmatpush.bf16.msra.mxu0 %v915
        %1084 = vmatpush.bf16.msra.mxu0 %v913
        %1085 = vmatpush.bf16.msra.mxu0 %v911
        %1086 = vmatpush.bf16.msra.mxu0 %v909
        %1087 = vmatpush.bf16.msra.mxu0 %v907
        %1088 = vmatpush.bf16.msra.mxu0 %v905
        %1089 = vmatpush.bf16.msra.mxu0 %v903
        %1090 = vmatpush.bf16.msra.mxu0 %v901
        %1091 = vmatmul.bf16.gmra.mxu0 %v436
        %v1092 = vpop.f32.mrf.mxu0
        %v1093 = vadd.f32 %v1079, %v1092
        %v1094 = vpop.f32.mrf.mxu0
        %v1095 = vadd.f32 %v1081, %v1094
        %1096 = vdwg.mxu0
        %1097 = vmatpush.bf16.msra.mxu0 %v836
        %1098 = vmatpush.bf16.msra.mxu0 %v834
        %1099 = vmatpush.bf16.msra.mxu0 %v832
        %1100 = vmatpush.bf16.msra.mxu0 %v830
        %1101 = vmatpush.bf16.msra.mxu0 %v828
        %1102 = vmatpush.bf16.msra.mxu0 %v826
        %1103 = vmatpush.bf16.msra.mxu0 %v824
        %1104 = vmatpush.bf16.msra.mxu0 %v822
        %1105 = vmatmul.bf16.gmra.mxu0 %v431
        %v1106 = vpop.f32.mrf.mxu0
        %v1107 = vadd.f32 0.0, %v1106
        %v1108 = vpop.f32.mrf.mxu0
        %v1109 = vadd.f32 0.0, %v1108
        %1110 = vdwg.mxu0
        %1111 = vmatpush.bf16.msra.mxu0 %v852
        %1112 = vmatpush.bf16.msra.mxu0 %v850
        %1113 = vmatpush.bf16.msra.mxu0 %v848
        %1114 = vmatpush.bf16.msra.mxu0 %v846
        %1115 = vmatpush.bf16.msra.mxu0 %v844
        %1116 = vmatpush.bf16.msra.mxu0 %v842
        %1117 = vmatpush.bf16.msra.mxu0 %v840
        %1118 = vmatpush.bf16.msra.mxu0 %v838
        %1119 = vmatmul.bf16.gmra.mxu0 %v432
        %v1120 = vpop.f32.mrf.mxu0
        %v1121 = vadd.f32 %v1107, %v1120
        %v1122 = vpop.f32.mrf.mxu0
        %v1123 = vadd.f32 %v1109, %v1122
        %1124 = vdwg.mxu0
        %1125 = vmatpush.bf16.msra.mxu0 %v868
        %1126 = vmatpush.bf16.msra.mxu0 %v866
        %1127 = vmatpush.bf16.msra.mxu0 %v864
        %1128 = vmatpush.bf16.msra.mxu0 %v862
        %1129 = vmatpush.bf16.msra.mxu0 %v860
        %1130 = vmatpush.bf16.msra.mxu0 %v858
        %1131 = vmatpush.bf16.msra.mxu0 %v856
        %1132 = vmatpush.bf16.msra.mxu0 %v854
        %1133 = vmatmul.bf16.gmra.mxu0 %v433
        %v1134 = vpop.f32.mrf.mxu0
        %v1135 = vadd.f32 %v1121, %v1134
        %v1136 = vpop.f32.mrf.mxu0
        %v1137 = vadd.f32 %v1123, %v1136
        %1138 = vdwg.mxu0
        %1139 = vmatpush.bf16.msra.mxu0 %v884
        %1140 = vmatpush.bf16.msra.mxu0 %v882
        %1141 = vmatpush.bf16.msra.mxu0 %v880
        %1142 = vmatpush.bf16.msra.mxu0 %v878
        %1143 = vmatpush.bf16.msra.mxu0 %v876
        %1144 = vmatpush.bf16.msra.mxu0 %v874
        %1145 = vmatpush.bf16.msra.mxu0 %v872
        %1146 = vmatpush.bf16.msra.mxu0 %v870
        %1147 = vmatmul.bf16.gmra.mxu0 %v434
        %v1148 = vpop.f32.mrf.mxu0
        %v1149 = vadd.f32 %v1135, %v1148
        %v1150 = vpop.f32.mrf.mxu0
        %v1151 = vadd.f32 %v1137, %v1150
        %1152 = vdwg.mxu0
        %1153 = vmatpush.bf16.msra.mxu0 %v900
        %1154 = vmatpush.bf16.msra.mxu0 %v898
        %1155 = vmatpush.bf16.msra.mxu0 %v896
        %1156 = vmatpush.bf16.msra.mxu0 %v894
        %1157 = vmatpush.bf16.msra.mxu0 %v892
        %1158 = vmatpush.bf16.msra.mxu0 %v890
        %1159 = vmatpush.bf16.msra.mxu0 %v888
        %1160 = vmatpush.bf16.msra.mxu0 %v886
        %1161 = vmatmul.bf16.gmra.mxu0 %v435
        %v1162 = vpop.f32.mrf.mxu0
        %v1163 = vadd.f32 %v1149, %v1162
        %v1164 = vpop.f32.mrf.mxu0
        %v1165 = vadd.f32 %v1151, %v1164
        %1166 = vdwg.mxu0
        %1167 = vmatpush.bf16.msra.mxu0 %v916
        %1168 = vmatpush.bf16.msra.mxu0 %v914
        %1169 = vmatpush.bf16.msra.mxu0 %v912
        %1170 = vmatpush.bf16.msra.mxu0 %v910
        %1171 = vmatpush.bf16.msra.mxu0 %v908
        %1172 = vmatpush.bf16.msra.mxu0 %v906
        %1173 = vmatpush.bf16.msra.mxu0 %v904
        %1174 = vmatpush.bf16.msra.mxu0 %v902
        %1175 = vmatmul.bf16.gmra.mxu0 %v436
        %v1176 = vpop.f32.mrf.mxu0
        %v1177 = vadd.f32 %v1163, %v1176
        %v1178 = vpop.f32.mrf.mxu0
        %v1179 = vadd.f32 %v1165, %v1178
        %1180 = vdwg.mxu0
        %v1181 = vld [vmem:[#allocation9] sm:$0x3]
        %v1183 = vperm.slane %v1181, 0
        %v1184 = vperm.slane %v1181, 1
        %v1187 = vmul.f32 %v1093, %v1183
        %v1188 = vmul.f32 %v1177, %v1184
        %v1189 = vmul.f32 %v1095, %v1183
        %v1190 = vmul.f32 %v1179, %v1184
        %v1191 = vld [vmem:[%s3] sm:$0x3]
        %v1193 = vperm.slane %v1191, 0
        %v1194 = vperm.slane %v1191, 1
        %v1197 = vadd.f32 %v1187, %v1193
        %v1198 = vadd.f32 %v1188, %v1194
        %v1199 = vadd.f32 %v1189, %v1193
        %v1200 = vadd.f32 %v1190, %v1194
        %v1201 = vmax.f32 %v1197, 0.0
        %v1202 = vmax.f32 %v1198, 0.0
        %v1203 = vmax.f32 %v1199, 0.0
        %v1204 = vmax.f32 %v1200, 0.0
        %v1209 = vrot.slane %v1201, 7
        %v1210 = vrot.slane %v1202, 7
        %v1211 = vrot.slane %v1203, 7
        %v1212 = vsel %vm383, %v1209, %v1211
        %v1213 = vrot.slane %v1204, 7
        %v1214 = vsel %vm383, %v1210, %v1213
        %1221 = vst [vmem:[#allocation3] sm:$0xfe] %v1209
        %1222 = vst [vmem:[#allocation3 + $0x8] sm:$0xfe] %v1210
        %1223 = vst [vmem:[#allocation3 + $0x10] sm:$0xff] %v1212
        %1224 = vst [vmem:[#allocation3 + $0x18] sm:$0xff] %v1214
        %1225 = vst [vmem:[#allocation3 + $0x20] sm:$0x1] %v1211
        %1226 = vst [vmem:[#allocation3 + $0x28] sm:$0x1] %v1213
        %v1227 = vld [vmem:[#allocation3] sm:$0xff]
        %v1228 = vld [vmem:[#allocation3 + $0x8] sm:$0xff]
        %v1229 = vld [vmem:[#allocation3 + $0x10] sm:$0xff]
        %v1230 = vld [vmem:[#allocation3 + $0x18] sm:$0xff]
        %v1231 = vld [vmem:[#allocation3] sm:$0xfc]
        %v1232 = vld [vmem:[#allocation3 + $0x8] sm:$0xfc]
        %v1233 = vld [vmem:[#allocation3 + $0x20] sm:$0x3]
        %v1234 = vld [vmem:[#allocation3 + $0x28] sm:$0x3]
        %v1241 = vrot.slane %v1231, 2
        %v1242 = vrot.slane %v1229, 2
        %v1243 = vsel %vm416, %v1241, %v1242
        %v1244 = vrot.slane %v1232, 2
        %v1245 = vrot.slane %v1230, 2
        %v1246 = vsel %vm416, %v1244, %v1245
        %v1247 = vrot.slane %v1233, 2
        %v1248 = vsel %vm416, %v1242, %v1247
        %v1249 = vrot.slane %v1234, 2
        %v1250 = vsel %vm416, %v1245, %v1249
        %v1255 = vpack.c.bf16 %v1229, %v1227
        %v1256 = vpack.c.bf16 %v1230, %v1228
        %v1257 = vpack.c.bf16 %v1203, %v1201
        %v1258 = vpack.c.bf16 %v1204, %v1202
        %v1259 = vpack.c.bf16 %v1248, %v1243
        %v1260 = vpack.c.bf16 %v1250, %v1246
        %v1261 = vld [vmem:[#allocation10] sm:$0xff]
        %v1262 = vld [vmem:[#allocation10 + $0x8] sm:$0xff]
        %v1263 = vld [vmem:[#allocation10 + $0x10] sm:$0xff]
        %v1264 = vld [vmem:[#allocation10 + $0x18] sm:$0xff]
        %v1265 = vld [vmem:[#allocation10 + $0x20] sm:$0xff]
        %v1266 = vld [vmem:[#allocation10 + $0x28] sm:$0xff]
        %v1267 = vld [vmem:[#allocation10 + $0x30] sm:$0xff]
        %v1268 = vld [vmem:[#allocation10 + $0x38] sm:$0xff]
        %v1269 = vld [vmem:[#allocation10 + $0x40] sm:$0xff]
        %v1270 = vld [vmem:[#allocation10 + $0x48] sm:$0xff]
        %v1271 = vld [vmem:[#allocation10 + $0x50] sm:$0xff]
        %v1272 = vld [vmem:[#allocation10 + $0x58] sm:$0xff]
        %v1273 = vld [vmem:[#allocation10 + $0x60] sm:$0xff]
        %v1274 = vld [vmem:[#allocation10 + $0x68] sm:$0xff]
        %v1275 = vld [vmem:[#allocation10 + $0x70] sm:$0xff]
        %v1276 = vld [vmem:[#allocation10 + $0x78] sm:$0xff]
        %v1277 = vld [vmem:[#allocation10 + $0x80] sm:$0xff]
        %v1278 = vld [vmem:[#allocation10 + $0x88] sm:$0xff]
        %v1279 = vld [vmem:[#allocation10 + $0x90] sm:$0xff]
        %v1280 = vld [vmem:[#allocation10 + $0x98] sm:$0xff]
        %v1281 = vld [vmem:[#allocation10 + $0xa0] sm:$0xff]
        %v1282 = vld [vmem:[#allocation10 + $0xa8] sm:$0xff]
        %v1283 = vld [vmem:[#allocation10 + $0xb0] sm:$0xff]
        %v1284 = vld [vmem:[#allocation10 + $0xb8] sm:$0xff]
        %v1285 = vld [vmem:[#allocation10 + $0xc0] sm:$0xff]
        %v1286 = vld [vmem:[#allocation10 + $0xc8] sm:$0xff]
        %v1287 = vld [vmem:[#allocation10 + $0xd0] sm:$0xff]
        %v1288 = vld [vmem:[#allocation10 + $0xd8] sm:$0xff]
        %v1289 = vld [vmem:[#allocation10 + $0xe0] sm:$0xff]
        %v1290 = vld [vmem:[#allocation10 + $0xe8] sm:$0xff]
        %v1291 = vld [vmem:[#allocation10 + $0xf0] sm:$0xff]
        %v1292 = vld [vmem:[#allocation10 + $0xf8] sm:$0xff]
        %v1293 = vld [vmem:[#allocation10 + $0x100] sm:$0xff]
        %v1294 = vld [vmem:[#allocation10 + $0x108] sm:$0xff]
        %v1295 = vld [vmem:[#allocation10 + $0x110] sm:$0xff]
        %v1296 = vld [vmem:[#allocation10 + $0x118] sm:$0xff]
        %v1297 = vld [vmem:[#allocation10 + $0x120] sm:$0xff]
        %v1298 = vld [vmem:[#allocation10 + $0x128] sm:$0xff]
        %v1299 = vld [vmem:[#allocation10 + $0x130] sm:$0xff]
        %v1300 = vld [vmem:[#allocation10 + $0x138] sm:$0xff]
        %v1301 = vld [vmem:[#allocation10 + $0x140] sm:$0xff]
        %v1302 = vld [vmem:[#allocation10 + $0x148] sm:$0xff]
        %v1303 = vld [vmem:[#allocation10 + $0x150] sm:$0xff]
        %v1304 = vld [vmem:[#allocation10 + $0x158] sm:$0xff]
        %v1305 = vld [vmem:[#allocation10 + $0x160] sm:$0xff]
        %v1306 = vld [vmem:[#allocation10 + $0x168] sm:$0xff]
        %v1307 = vld [vmem:[#allocation10 + $0x170] sm:$0xff]
        %v1308 = vld [vmem:[#allocation10 + $0x178] sm:$0xff]
        %v1309 = vld [vmem:[#allocation10 + $0x180] sm:$0xff]
        %v1310 = vld [vmem:[#allocation10 + $0x188] sm:$0xff]
        %v1311 = vld [vmem:[#allocation10 + $0x190] sm:$0xff]
        %v1312 = vld [vmem:[#allocation10 + $0x198] sm:$0xff]
        %v1313 = vld [vmem:[#allocation10 + $0x1a0] sm:$0xff]
        %v1314 = vld [vmem:[#allocation10 + $0x1a8] sm:$0xff]
        %v1315 = vld [vmem:[#allocation10 + $0x1b0] sm:$0xff]
        %v1316 = vld [vmem:[#allocation10 + $0x1b8] sm:$0xff]
        %v1317 = vld [vmem:[#allocation10 + $0x1c0] sm:$0xff]
        %v1318 = vld [vmem:[#allocation10 + $0x1c8] sm:$0xff]
        %v1319 = vld [vmem:[#allocation10 + $0x1d0] sm:$0xff]
        %v1320 = vld [vmem:[#allocation10 + $0x1d8] sm:$0xff]
        %v1321 = vld [vmem:[#allocation10 + $0x1e0] sm:$0xff]
        %v1322 = vld [vmem:[#allocation10 + $0x1e8] sm:$0xff]
        %v1323 = vld [vmem:[#allocation10 + $0x1f0] sm:$0xff]
        %v1324 = vld [vmem:[#allocation10 + $0x1f8] sm:$0xff]
        %v1325 = vld [vmem:[#allocation10 + $0x200] sm:$0xff]
        %v1326 = vld [vmem:[#allocation10 + $0x208] sm:$0xff]
        %v1327 = vld [vmem:[#allocation10 + $0x210] sm:$0xff]
        %v1328 = vld [vmem:[#allocation10 + $0x218] sm:$0xff]
        %v1329 = vld [vmem:[#allocation10 + $0x220] sm:$0xff]
        %v1330 = vld [vmem:[#allocation10 + $0x228] sm:$0xff]
        %v1331 = vld [vmem:[#allocation10 + $0x230] sm:$0xff]
        %v1332 = vld [vmem:[#allocation10 + $0x238] sm:$0xff]
        %v1333 = vld [vmem:[#allocation10 + $0x240] sm:$0xff]
        %v1334 = vld [vmem:[#allocation10 + $0x248] sm:$0xff]
        %v1335 = vld [vmem:[#allocation10 + $0x250] sm:$0xff]
        %v1336 = vld [vmem:[#allocation10 + $0x258] sm:$0xff]
        %v1337 = vld [vmem:[#allocation10 + $0x260] sm:$0xff]
        %v1338 = vld [vmem:[#allocation10 + $0x268] sm:$0xff]
        %v1339 = vld [vmem:[#allocation10 + $0x270] sm:$0xff]
        %v1340 = vld [vmem:[#allocation10 + $0x278] sm:$0xff]
        %v1341 = vld [vmem:[#allocation10 + $0x280] sm:$0xff]
        %v1342 = vld [vmem:[#allocation10 + $0x288] sm:$0xff]
        %v1343 = vld [vmem:[#allocation10 + $0x290] sm:$0xff]
        %v1344 = vld [vmem:[#allocation10 + $0x298] sm:$0xff]
        %v1345 = vld [vmem:[#allocation10 + $0x2a0] sm:$0xff]
        %v1346 = vld [vmem:[#allocation10 + $0x2a8] sm:$0xff]
        %v1347 = vld [vmem:[#allocation10 + $0x2b0] sm:$0xff]
        %v1348 = vld [vmem:[#allocation10 + $0x2b8] sm:$0xff]
        %v1349 = vld [vmem:[#allocation10 + $0x2c0] sm:$0xff]
        %v1350 = vld [vmem:[#allocation10 + $0x2c8] sm:$0xff]
        %v1351 = vld [vmem:[#allocation10 + $0x2d0] sm:$0xff]
        %v1352 = vld [vmem:[#allocation10 + $0x2d8] sm:$0xff]
        %v1353 = vld [vmem:[#allocation10 + $0x2e0] sm:$0xff]
        %v1354 = vld [vmem:[#allocation10 + $0x2e8] sm:$0xff]
        %v1355 = vld [vmem:[#allocation10 + $0x2f0] sm:$0xff]
        %v1356 = vld [vmem:[#allocation10 + $0x2f8] sm:$0xff]
        %v1453 = vunpack.c.l.b16 %v1261
        %v1454 = vunpack.c.h.b16 %v1261
        %v1455 = vunpack.c.l.b16 %v1262
        %v1456 = vunpack.c.h.b16 %v1262
        %v1457 = vunpack.c.l.b16 %v1263
        %v1458 = vunpack.c.h.b16 %v1263
        %v1459 = vunpack.c.l.b16 %v1264
        %v1460 = vunpack.c.h.b16 %v1264
        %v1461 = vunpack.c.l.b16 %v1265
        %v1462 = vunpack.c.h.b16 %v1265
        %v1463 = vunpack.c.l.b16 %v1266
        %v1464 = vunpack.c.h.b16 %v1266
        %v1465 = vunpack.c.l.b16 %v1267
        %v1466 = vunpack.c.h.b16 %v1267
        %v1467 = vunpack.c.l.b16 %v1268
        %v1468 = vunpack.c.h.b16 %v1268
        %v1469 = vunpack.c.l.b16 %v1269
        %v1470 = vunpack.c.h.b16 %v1269
        %v1471 = vunpack.c.l.b16 %v1270
        %v1472 = vunpack.c.h.b16 %v1270
        %v1473 = vunpack.c.l.b16 %v1271
        %v1474 = vunpack.c.h.b16 %v1271
        %v1475 = vunpack.c.l.b16 %v1272
        %v1476 = vunpack.c.h.b16 %v1272
        %v1477 = vunpack.c.l.b16 %v1273
        %v1478 = vunpack.c.h.b16 %v1273
        %v1479 = vunpack.c.l.b16 %v1274
        %v1480 = vunpack.c.h.b16 %v1274
        %v1481 = vunpack.c.l.b16 %v1275
        %v1482 = vunpack.c.h.b16 %v1275
        %v1483 = vunpack.c.l.b16 %v1276
        %v1484 = vunpack.c.h.b16 %v1276
        %v1485 = vunpack.c.l.b16 %v1277
        %v1486 = vunpack.c.h.b16 %v1277
        %v1487 = vunpack.c.l.b16 %v1278
        %v1488 = vunpack.c.h.b16 %v1278
        %v1489 = vunpack.c.l.b16 %v1279
        %v1490 = vunpack.c.h.b16 %v1279
        %v1491 = vunpack.c.l.b16 %v1280
        %v1492 = vunpack.c.h.b16 %v1280
        %v1493 = vunpack.c.l.b16 %v1281
        %v1494 = vunpack.c.h.b16 %v1281
        %v1495 = vunpack.c.l.b16 %v1282
        %v1496 = vunpack.c.h.b16 %v1282
        %v1497 = vunpack.c.l.b16 %v1283
        %v1498 = vunpack.c.h.b16 %v1283
        %v1499 = vunpack.c.l.b16 %v1284
        %v1500 = vunpack.c.h.b16 %v1284
        %v1501 = vunpack.c.l.b16 %v1285
        %v1502 = vunpack.c.h.b16 %v1285
        %v1503 = vunpack.c.l.b16 %v1286
        %v1504 = vunpack.c.h.b16 %v1286
        %v1505 = vunpack.c.l.b16 %v1287
        %v1506 = vunpack.c.h.b16 %v1287
        %v1507 = vunpack.c.l.b16 %v1288
        %v1508 = vunpack.c.h.b16 %v1288
        %v1509 = vunpack.c.l.b16 %v1289
        %v1510 = vunpack.c.h.b16 %v1289
        %v1511 = vunpack.c.l.b16 %v1290
        %v1512 = vunpack.c.h.b16 %v1290
        %v1513 = vunpack.c.l.b16 %v1291
        %v1514 = vunpack.c.h.b16 %v1291
        %v1515 = vunpack.c.l.b16 %v1292
        %v1516 = vunpack.c.h.b16 %v1292
        %v1517 = vunpack.c.l.b16 %v1293
        %v1518 = vunpack.c.h.b16 %v1293
        %v1519 = vunpack.c.l.b16 %v1294
        %v1520 = vunpack.c.h.b16 %v1294
        %v1521 = vunpack.c.l.b16 %v1295
        %v1522 = vunpack.c.h.b16 %v1295
        %v1523 = vunpack.c.l.b16 %v1296
        %v1524 = vunpack.c.h.b16 %v1296
        %v1525 = vunpack.c.l.b16 %v1297
        %v1526 = vunpack.c.h.b16 %v1297
        %v1527 = vunpack.c.l.b16 %v1298
        %v1528 = vunpack.c.h.b16 %v1298
        %v1529 = vunpack.c.l.b16 %v1299
        %v1530 = vunpack.c.h.b16 %v1299
        %v1531 = vunpack.c.l.b16 %v1300
        %v1532 = vunpack.c.h.b16 %v1300
        %v1533 = vunpack.c.l.b16 %v1301
        %v1534 = vunpack.c.h.b16 %v1301
        %v1535 = vunpack.c.l.b16 %v1302
        %v1536 = vunpack.c.h.b16 %v1302
        %v1537 = vunpack.c.l.b16 %v1303
        %v1538 = vunpack.c.h.b16 %v1303
        %v1539 = vunpack.c.l.b16 %v1304
        %v1540 = vunpack.c.h.b16 %v1304
        %v1541 = vunpack.c.l.b16 %v1305
        %v1542 = vunpack.c.h.b16 %v1305
        %v1543 = vunpack.c.l.b16 %v1306
        %v1544 = vunpack.c.h.b16 %v1306
        %v1545 = vunpack.c.l.b16 %v1307
        %v1546 = vunpack.c.h.b16 %v1307
        %v1547 = vunpack.c.l.b16 %v1308
        %v1548 = vunpack.c.h.b16 %v1308
        %v1549 = vunpack.c.l.b16 %v1309
        %v1550 = vunpack.c.h.b16 %v1309
        %v1551 = vunpack.c.l.b16 %v1310
        %v1552 = vunpack.c.h.b16 %v1310
        %v1553 = vunpack.c.l.b16 %v1311
        %v1554 = vunpack.c.h.b16 %v1311
        %v1555 = vunpack.c.l.b16 %v1312
        %v1556 = vunpack.c.h.b16 %v1312
        %v1557 = vunpack.c.l.b16 %v1313
        %v1558 = vunpack.c.h.b16 %v1313
        %v1559 = vunpack.c.l.b16 %v1314
        %v1560 = vunpack.c.h.b16 %v1314
        %v1561 = vunpack.c.l.b16 %v1315
        %v1562 = vunpack.c.h.b16 %v1315
        %v1563 = vunpack.c.l.b16 %v1316
        %v1564 = vunpack.c.h.b16 %v1316
        %v1565 = vunpack.c.l.b16 %v1317
        %v1566 = vunpack.c.h.b16 %v1317
        %v1567 = vunpack.c.l.b16 %v1318
        %v1568 = vunpack.c.h.b16 %v1318
        %v1569 = vunpack.c.l.b16 %v1319
        %v1570 = vunpack.c.h.b16 %v1319
        %v1571 = vunpack.c.l.b16 %v1320
        %v1572 = vunpack.c.h.b16 %v1320
        %v1573 = vunpack.c.l.b16 %v1321
        %v1574 = vunpack.c.h.b16 %v1321
        %v1575 = vunpack.c.l.b16 %v1322
        %v1576 = vunpack.c.h.b16 %v1322
        %v1577 = vunpack.c.l.b16 %v1323
        %v1578 = vunpack.c.h.b16 %v1323
        %v1579 = vunpack.c.l.b16 %v1324
        %v1580 = vunpack.c.h.b16 %v1324
        %v1581 = vunpack.c.l.b16 %v1325
        %v1582 = vunpack.c.h.b16 %v1325
        %v1583 = vunpack.c.l.b16 %v1326
        %v1584 = vunpack.c.h.b16 %v1326
        %v1585 = vunpack.c.l.b16 %v1327
        %v1586 = vunpack.c.h.b16 %v1327
        %v1587 = vunpack.c.l.b16 %v1328
        %v1588 = vunpack.c.h.b16 %v1328
        %v1589 = vunpack.c.l.b16 %v1329
        %v1590 = vunpack.c.h.b16 %v1329
        %v1591 = vunpack.c.l.b16 %v1330
        %v1592 = vunpack.c.h.b16 %v1330
        %v1593 = vunpack.c.l.b16 %v1331
        %v1594 = vunpack.c.h.b16 %v1331
        %v1595 = vunpack.c.l.b16 %v1332
        %v1596 = vunpack.c.h.b16 %v1332
        %v1597 = vunpack.c.l.b16 %v1333
        %v1598 = vunpack.c.h.b16 %v1333
        %v1599 = vunpack.c.l.b16 %v1334
        %v1600 = vunpack.c.h.b16 %v1334
        %v1601 = vunpack.c.l.b16 %v1335
        %v1602 = vunpack.c.h.b16 %v1335
        %v1603 = vunpack.c.l.b16 %v1336
        %v1604 = vunpack.c.h.b16 %v1336
        %v1605 = vunpack.c.l.b16 %v1337
        %v1606 = vunpack.c.h.b16 %v1337
        %v1607 = vunpack.c.l.b16 %v1338
        %v1608 = vunpack.c.h.b16 %v1338
        %v1609 = vunpack.c.l.b16 %v1339
        %v1610 = vunpack.c.h.b16 %v1339
        %v1611 = vunpack.c.l.b16 %v1340
        %v1612 = vunpack.c.h.b16 %v1340
        %v1613 = vunpack.c.l.b16 %v1341
        %v1614 = vunpack.c.h.b16 %v1341
        %v1615 = vunpack.c.l.b16 %v1342
        %v1616 = vunpack.c.h.b16 %v1342
        %v1617 = vunpack.c.l.b16 %v1343
        %v1618 = vunpack.c.h.b16 %v1343
        %v1619 = vunpack.c.l.b16 %v1344
        %v1620 = vunpack.c.h.b16 %v1344
        %v1621 = vunpack.c.l.b16 %v1345
        %v1622 = vunpack.c.h.b16 %v1345
        %v1623 = vunpack.c.l.b16 %v1346
        %v1624 = vunpack.c.h.b16 %v1346
        %v1625 = vunpack.c.l.b16 %v1347
        %v1626 = vunpack.c.h.b16 %v1347
        %v1627 = vunpack.c.l.b16 %v1348
        %v1628 = vunpack.c.h.b16 %v1348
        %v1629 = vunpack.c.l.b16 %v1349
        %v1630 = vunpack.c.h.b16 %v1349
        %v1631 = vunpack.c.l.b16 %v1350
        %v1632 = vunpack.c.h.b16 %v1350
        %v1633 = vunpack.c.l.b16 %v1351
        %v1634 = vunpack.c.h.b16 %v1351
        %v1635 = vunpack.c.l.b16 %v1352
        %v1636 = vunpack.c.h.b16 %v1352
        %v1637 = vunpack.c.l.b16 %v1353
        %v1638 = vunpack.c.h.b16 %v1353
        %v1639 = vunpack.c.l.b16 %v1354
        %v1640 = vunpack.c.h.b16 %v1354
        %v1641 = vunpack.c.l.b16 %v1355
        %v1642 = vunpack.c.h.b16 %v1355
        %v1643 = vunpack.c.l.b16 %v1356
        %v1644 = vunpack.c.h.b16 %v1356
        %v1645 = vpack.c.b16 %v1455, %v1453
        %v1646 = vpack.c.b16 %v1456, %v1454
        %v1647 = vpack.c.b16 %v1459, %v1457
        %v1648 = vpack.c.b16 %v1460, %v1458
        %v1649 = vpack.c.b16 %v1463, %v1461
        %v1650 = vpack.c.b16 %v1464, %v1462
        %v1651 = vpack.c.b16 %v1467, %v1465
        %v1652 = vpack.c.b16 %v1468, %v1466
        %v1653 = vpack.c.b16 %v1471, %v1469
        %v1654 = vpack.c.b16 %v1472, %v1470
        %v1655 = vpack.c.b16 %v1475, %v1473
        %v1656 = vpack.c.b16 %v1476, %v1474
        %v1657 = vpack.c.b16 %v1479, %v1477
        %v1658 = vpack.c.b16 %v1480, %v1478
        %v1659 = vpack.c.b16 %v1483, %v1481
        %v1660 = vpack.c.b16 %v1484, %v1482
        %v1661 = vpack.c.b16 %v1487, %v1485
        %v1662 = vpack.c.b16 %v1488, %v1486
        %v1663 = vpack.c.b16 %v1491, %v1489
        %v1664 = vpack.c.b16 %v1492, %v1490
        %v1665 = vpack.c.b16 %v1495, %v1493
        %v1666 = vpack.c.b16 %v1496, %v1494
        %v1667 = vpack.c.b16 %v1499, %v1497
        %v1668 = vpack.c.b16 %v1500, %v1498
        %v1669 = vpack.c.b16 %v1503, %v1501
        %v1670 = vpack.c.b16 %v1504, %v1502
        %v1671 = vpack.c.b16 %v1507, %v1505
        %v1672 = vpack.c.b16 %v1508, %v1506
        %v1673 = vpack.c.b16 %v1511, %v1509
        %v1674 = vpack.c.b16 %v1512, %v1510
        %v1675 = vpack.c.b16 %v1515, %v1513
        %v1676 = vpack.c.b16 %v1516, %v1514
        %v1677 = vpack.c.b16 %v1519, %v1517
        %v1678 = vpack.c.b16 %v1520, %v1518
        %v1679 = vpack.c.b16 %v1523, %v1521
        %v1680 = vpack.c.b16 %v1524, %v1522
        %v1681 = vpack.c.b16 %v1527, %v1525
        %v1682 = vpack.c.b16 %v1528, %v1526
        %v1683 = vpack.c.b16 %v1531, %v1529
        %v1684 = vpack.c.b16 %v1532, %v1530
        %v1685 = vpack.c.b16 %v1535, %v1533
        %v1686 = vpack.c.b16 %v1536, %v1534
        %v1687 = vpack.c.b16 %v1539, %v1537
        %v1688 = vpack.c.b16 %v1540, %v1538
        %v1689 = vpack.c.b16 %v1543, %v1541
        %v1690 = vpack.c.b16 %v1544, %v1542
        %v1691 = vpack.c.b16 %v1547, %v1545
        %v1692 = vpack.c.b16 %v1548, %v1546
        %v1693 = vpack.c.b16 %v1551, %v1549
        %v1694 = vpack.c.b16 %v1552, %v1550
        %v1695 = vpack.c.b16 %v1555, %v1553
        %v1696 = vpack.c.b16 %v1556, %v1554
        %v1697 = vpack.c.b16 %v1559, %v1557
        %v1698 = vpack.c.b16 %v1560, %v1558
        %v1699 = vpack.c.b16 %v1563, %v1561
        %v1700 = vpack.c.b16 %v1564, %v1562
        %v1701 = vpack.c.b16 %v1567, %v1565
        %v1702 = vpack.c.b16 %v1568, %v1566
        %v1703 = vpack.c.b16 %v1571, %v1569
        %v1704 = vpack.c.b16 %v1572, %v1570
        %v1705 = vpack.c.b16 %v1575, %v1573
        %v1706 = vpack.c.b16 %v1576, %v1574
        %v1707 = vpack.c.b16 %v1579, %v1577
        %v1708 = vpack.c.b16 %v1580, %v1578
        %v1709 = vpack.c.b16 %v1583, %v1581
        %v1710 = vpack.c.b16 %v1584, %v1582
        %v1711 = vpack.c.b16 %v1587, %v1585
        %v1712 = vpack.c.b16 %v1588, %v1586
        %v1713 = vpack.c.b16 %v1591, %v1589
        %v1714 = vpack.c.b16 %v1592, %v1590
        %v1715 = vpack.c.b16 %v1595, %v1593
        %v1716 = vpack.c.b16 %v1596, %v1594
        %v1717 = vpack.c.b16 %v1599, %v1597
        %v1718 = vpack.c.b16 %v1600, %v1598
        %v1719 = vpack.c.b16 %v1603, %v1601
        %v1720 = vpack.c.b16 %v1604, %v1602
        %v1721 = vpack.c.b16 %v1607, %v1605
        %v1722 = vpack.c.b16 %v1608, %v1606
        %v1723 = vpack.c.b16 %v1611, %v1609
        %v1724 = vpack.c.b16 %v1612, %v1610
        %v1725 = vpack.c.b16 %v1615, %v1613
        %v1726 = vpack.c.b16 %v1616, %v1614
        %v1727 = vpack.c.b16 %v1619, %v1617
        %v1728 = vpack.c.b16 %v1620, %v1618
        %v1729 = vpack.c.b16 %v1623, %v1621
        %v1730 = vpack.c.b16 %v1624, %v1622
        %v1731 = vpack.c.b16 %v1627, %v1625
        %v1732 = vpack.c.b16 %v1628, %v1626
        %v1733 = vpack.c.b16 %v1631, %v1629
        %v1734 = vpack.c.b16 %v1632, %v1630
        %v1735 = vpack.c.b16 %v1635, %v1633
        %v1736 = vpack.c.b16 %v1636, %v1634
        %v1737 = vpack.c.b16 %v1639, %v1637
        %v1738 = vpack.c.b16 %v1640, %v1638
        %v1739 = vpack.c.b16 %v1643, %v1641
        %v1740 = vpack.c.b16 %v1644, %v1642
        %1837 = vmatpush.bf16.msra.mxu0 %v1659
        %1838 = vmatpush.bf16.msra.mxu0 %v1657
        %1839 = vmatpush.bf16.msra.mxu0 %v1655
        %1840 = vmatpush.bf16.msra.mxu0 %v1653
        %1841 = vmatpush.bf16.msra.mxu0 %v1651
        %1842 = vmatpush.bf16.msra.mxu0 %v1649
        %1843 = vmatpush.bf16.msra.mxu0 %v1647
        %1844 = vmatpush.bf16.msra.mxu0 %v1645
        %1845 = vmatmul.bf16.gmra.mxu0 %v1255
        %v1846 = vpop.f32.mrf.mxu0
        %v1847 = vadd.f32 0.0, %v1846
        %v1848 = vpop.f32.mrf.mxu0
        %v1849 = vadd.f32 0.0, %v1848
        %1850 = vdwg.mxu0
        %1851 = vmatpush.bf16.msra.mxu0 %v1675
        %1852 = vmatpush.bf16.msra.mxu0 %v1673
        %1853 = vmatpush.bf16.msra.mxu0 %v1671
        %1854 = vmatpush.bf16.msra.mxu0 %v1669
        %1855 = vmatpush.bf16.msra.mxu0 %v1667
        %1856 = vmatpush.bf16.msra.mxu0 %v1665
        %1857 = vmatpush.bf16.msra.mxu0 %v1663
        %1858 = vmatpush.bf16.msra.mxu0 %v1661
        %1859 = vmatmul.bf16.gmra.mxu0 %v1256
        %v1860 = vpop.f32.mrf.mxu0
        %v1861 = vadd.f32 %v1847, %v1860
        %v1862 = vpop.f32.mrf.mxu0
        %v1863 = vadd.f32 %v1849, %v1862
        %1864 = vdwg.mxu0
        %1865 = vmatpush.bf16.msra.mxu0 %v1691
        %1866 = vmatpush.bf16.msra.mxu0 %v1689
        %1867 = vmatpush.bf16.msra.mxu0 %v1687
        %1868 = vmatpush.bf16.msra.mxu0 %v1685
        %1869 = vmatpush.bf16.msra.mxu0 %v1683
        %1870 = vmatpush.bf16.msra.mxu0 %v1681
        %1871 = vmatpush.bf16.msra.mxu0 %v1679
        %1872 = vmatpush.bf16.msra.mxu0 %v1677
        %1873 = vmatmul.bf16.gmra.mxu0 %v1257
        %v1874 = vpop.f32.mrf.mxu0
        %v1875 = vadd.f32 %v1861, %v1874
        %v1876 = vpop.f32.mrf.mxu0
        %v1877 = vadd.f32 %v1863, %v1876
        %1878 = vdwg.mxu0
        %1879 = vmatpush.bf16.msra.mxu0 %v1707
        %1880 = vmatpush.bf16.msra.mxu0 %v1705
        %1881 = vmatpush.bf16.msra.mxu0 %v1703
        %1882 = vmatpush.bf16.msra.mxu0 %v1701
        %1883 = vmatpush.bf16.msra.mxu0 %v1699
        %1884 = vmatpush.bf16.msra.mxu0 %v1697
        %1885 = vmatpush.bf16.msra.mxu0 %v1695
        %1886 = vmatpush.bf16.msra.mxu0 %v1693
        %1887 = vmatmul.bf16.gmra.mxu0 %v1258
        %v1888 = vpop.f32.mrf.mxu0
        %v1889 = vadd.f32 %v1875, %v1888
        %v1890 = vpop.f32.mrf.mxu0
        %v1891 = vadd.f32 %v1877, %v1890
        %1892 = vdwg.mxu0
        %1893 = vmatpush.bf16.msra.mxu0 %v1723
        %1894 = vmatpush.bf16.msra.mxu0 %v1721
        %1895 = vmatpush.bf16.msra.mxu0 %v1719
        %1896 = vmatpush.bf16.msra.mxu0 %v1717
        %1897 = vmatpush.bf16.msra.mxu0 %v1715
        %1898 = vmatpush.bf16.msra.mxu0 %v1713
        %1899 = vmatpush.bf16.msra.mxu0 %v1711
        %1900 = vmatpush.bf16.msra.mxu0 %v1709
        %1901 = vmatmul.bf16.gmra.mxu0 %v1259
        %v1902 = vpop.f32.mrf.mxu0
        %v1903 = vadd.f32 %v1889, %v1902
        %v1904 = vpop.f32.mrf.mxu0
        %v1905 = vadd.f32 %v1891, %v1904
        %1906 = vdwg.mxu0
        %1907 = vmatpush.bf16.msra.mxu0 %v1739
        %1908 = vmatpush.bf16.msra.mxu0 %v1737
        %1909 = vmatpush.bf16.msra.mxu0 %v1735
        %1910 = vmatpush.bf16.msra.mxu0 %v1733
        %1911 = vmatpush.bf16.msra.mxu0 %v1731
        %1912 = vmatpush.bf16.msra.mxu0 %v1729
        %1913 = vmatpush.bf16.msra.mxu0 %v1727
        %1914 = vmatpush.bf16.msra.mxu0 %v1725
        %1915 = vmatmul.bf16.gmra.mxu0 %v1260
        %v1916 = vpop.f32.mrf.mxu0
        %v1917 = vadd.f32 %v1903, %v1916
        %v1918 = vpop.f32.mrf.mxu0
        %v1919 = vadd.f32 %v1905, %v1918
        %1920 = vdwg.mxu0
        %1921 = vmatpush.bf16.msra.mxu0 %v1660
        %1922 = vmatpush.bf16.msra.mxu0 %v1658
        %1923 = vmatpush.bf16.msra.mxu0 %v1656
        %1924 = vmatpush.bf16.msra.mxu0 %v1654
        %1925 = vmatpush.bf16.msra.mxu0 %v1652
        %1926 = vmatpush.bf16.msra.mxu0 %v1650
        %1927 = vmatpush.bf16.msra.mxu0 %v1648
        %1928 = vmatpush.bf16.msra.mxu0 %v1646
        %1929 = vmatmul.bf16.gmra.mxu0 %v1255
        %v1930 = vpop.f32.mrf.mxu0
        %v1931 = vadd.f32 0.0, %v1930
        %v1932 = vpop.f32.mrf.mxu0
        %v1933 = vadd.f32 0.0, %v1932
        %1934 = vdwg.mxu0
        %1935 = vmatpush.bf16.msra.mxu0 %v1676
        %1936 = vmatpush.bf16.msra.mxu0 %v1674
        %1937 = vmatpush.bf16.msra.mxu0 %v1672
        %1938 = vmatpush.bf16.msra.mxu0 %v1670
        %1939 = vmatpush.bf16.msra.mxu0 %v1668
        %1940 = vmatpush.bf16.msra.mxu0 %v1666
        %1941 = vmatpush.bf16.msra.mxu0 %v1664
        %1942 = vmatpush.bf16.msra.mxu0 %v1662
        %1943 = vmatmul.bf16.gmra.mxu0 %v1256
        %v1944 = vpop.f32.mrf.mxu0
        %v1945 = vadd.f32 %v1931, %v1944
        %v1946 = vpop.f32.mrf.mxu0
        %v1947 = vadd.f32 %v1933, %v1946
        %1948 = vdwg.mxu0
        %1949 = vmatpush.bf16.msra.mxu0 %v1692
        %1950 = vmatpush.bf16.msra.mxu0 %v1690
        %1951 = vmatpush.bf16.msra.mxu0 %v1688
        %1952 = vmatpush.bf16.msra.mxu0 %v1686
        %1953 = vmatpush.bf16.msra.mxu0 %v1684
        %1954 = vmatpush.bf16.msra.mxu0 %v1682
        %1955 = vmatpush.bf16.msra.mxu0 %v1680
        %1956 = vmatpush.bf16.msra.mxu0 %v1678
        %1957 = vmatmul.bf16.gmra.mxu0 %v1257
        %v1958 = vpop.f32.mrf.mxu0
        %v1959 = vadd.f32 %v1945, %v1958
        %v1960 = vpop.f32.mrf.mxu0
        %v1961 = vadd.f32 %v1947, %v1960
        %1962 = vdwg.mxu0
        %1963 = vmatpush.bf16.msra.mxu0 %v1708
        %1964 = vmatpush.bf16.msra.mxu0 %v1706
        %1965 = vmatpush.bf16.msra.mxu0 %v1704
        %1966 = vmatpush.bf16.msra.mxu0 %v1702
        %1967 = vmatpush.bf16.msra.mxu0 %v1700
        %1968 = vmatpush.bf16.msra.mxu0 %v1698
        %1969 = vmatpush.bf16.msra.mxu0 %v1696
        %1970 = vmatpush.bf16.msra.mxu0 %v1694
        %1971 = vmatmul.bf16.gmra.mxu0 %v1258
        %v1972 = vpop.f32.mrf.mxu0
        %v1973 = vadd.f32 %v1959, %v1972
        %v1974 = vpop.f32.mrf.mxu0
        %v1975 = vadd.f32 %v1961, %v1974
        %1976 = vdwg.mxu0
        %1977 = vmatpush.bf16.msra.mxu0 %v1724
        %1978 = vmatpush.bf16.msra.mxu0 %v1722
        %1979 = vmatpush.bf16.msra.mxu0 %v1720
        %1980 = vmatpush.bf16.msra.mxu0 %v1718
        %1981 = vmatpush.bf16.msra.mxu0 %v1716
        %1982 = vmatpush.bf16.msra.mxu0 %v1714
        %1983 = vmatpush.bf16.msra.mxu0 %v1712
        %1984 = vmatpush.bf16.msra.mxu0 %v1710
        %1985 = vmatmul.bf16.gmra.mxu0 %v1259
        %v1986 = vpop.f32.mrf.mxu0
        %v1987 = vadd.f32 %v1973, %v1986
        %v1988 = vpop.f32.mrf.mxu0
        %v1989 = vadd.f32 %v1975, %v1988
        %1990 = vdwg.mxu0
        %1991 = vmatpush.bf16.msra.mxu0 %v1740
        %1992 = vmatpush.bf16.msra.mxu0 %v1738
        %1993 = vmatpush.bf16.msra.mxu0 %v1736
        %1994 = vmatpush.bf16.msra.mxu0 %v1734
        %1995 = vmatpush.bf16.msra.mxu0 %v1732
        %1996 = vmatpush.bf16.msra.mxu0 %v1730
        %1997 = vmatpush.bf16.msra.mxu0 %v1728
        %1998 = vmatpush.bf16.msra.mxu0 %v1726
        %1999 = vmatmul.bf16.gmra.mxu0 %v1260
        %v2000 = vpop.f32.mrf.mxu0
        %v2001 = vadd.f32 %v1987, %v2000
        %v2002 = vpop.f32.mrf.mxu0
        %v2003 = vadd.f32 %v1989, %v2002
        %2004 = vdwg.mxu0
        %v2005 = vld [vmem:[%s5] sm:$0x3]
        %v2007 = vperm.slane %v2005, 0
        %v2008 = vperm.slane %v2005, 1
        %v2011 = vmul.f32 %v1917, %v2007
        %v2012 = vmul.f32 %v2001, %v2008
        %v2013 = vmul.f32 %v1919, %v2007
        %v2014 = vmul.f32 %v2003, %v2008
        %v2015 = vld [vmem:[#allocation12] sm:$0x3]
        %v2017 = vperm.slane %v2015, 0
        %v2018 = vperm.slane %v2015, 1
        %v2021 = vadd.f32 %v2011, %v2017
        %v2022 = vadd.f32 %v2012, %v2018
        %v2023 = vadd.f32 %v2013, %v2017
        %v2024 = vadd.f32 %v2014, %v2018
        %v2025 = vadd.f32 %v2021, %v375
        %v2026 = vadd.f32 %v2022, %v376
        %v2027 = vadd.f32 %v2023, %v377
        %v2028 = vadd.f32 %v2024, %v378
        %v2029 = vmax.f32 %v2025, 0.0
        %v2030 = vmax.f32 %v2026, 0.0
        %v2031 = vmax.f32 %v2027, 0.0
        %v2032 = vmax.f32 %v2028, 0.0
        %2033 = vst [vmem:[%s360] sm:$0xff] %v2029
        %2034 = vst [vmem:[%s360 + $0x8] sm:$0xff] %v2030
        %2035 = vst [vmem:[%s360 + $0x10] sm:$0xff] %v2031
        %2036 = vst [vmem:[%s360 + $0x18] sm:$0xff] %v2032
        %s2037 = sand.u32 %s186, 1
        %s2038 = scalar_lea.sflag [#allocation6], %s2037
        %s2039 = sand.u32 %s186, 1
        %s2040 = smul.addr %s2039, 32
        %s2041 = scalar_lea.vmem [#allocation13], %s2040
        // Predicated region
        $region69: #{tpu_custom_call.1} parent=47 // pred_check
          %p2042 = pneg %p196
        $region70: #{tpu_custom_call.1} parent=47 // pred_check_branch
          %2044 = sbr.rel (%p2042) target = $region72
        $region71: #{tpu_custom_call.1} parent=47 // pred_region
          %2046 = vsyncadd %s2038, 0
          %s2047 = smul.addr %s26, 4
          %s2048 = smul.addr %s2047, 8
          %s2049 = scalar_lea.hbm %s7, %s2048
          %s2050 = sshll.u32 %s2041, 4
          %s2051 = int_to_ptr.vmem [resolvable:$true] %s2050
          %s2052 = sshll.u32 %s2049, 4
          %s2053 = int_to_ptr.hbm [resolvable:$true] %s2052
          %2058 = dma.vmem_to_hbm [thread:$0]  %s2051, 512, %s2053, %s2038, 256, 256, 16
        $region72: #{tpu_custom_call.1} parent=47 // pred_fallthru
          _
      $region48: #{tpu_custom_call.1} parent=5 // pred_fallthru
        _
      %p2059 = scmp.le.s32.totalorder 2, %s21
      // Predicated region
      $region73: #{tpu_custom_call.1} parent=5 // pred_check
        %p2060 = pneg %p2059
      $region74: #{tpu_custom_call.1} parent=5 // pred_check_branch
        %2062 = sbr.rel (%p2060) target = $region76
      $region75: #{tpu_custom_call.1} parent=5 // pred_region
        %s2063 = ssub.s32 %s21, 2
        // Predicated region
        $region77: #{tpu_custom_call.1} parent=75 // pred_check
          %p2064 = pneg %p202
        $region78: #{tpu_custom_call.1} parent=75 // pred_check_branch
          %2066 = sbr.rel (%p2064) target = $region80
        $region79: #{tpu_custom_call.1} parent=75 // pred_region
          %s2067 = sand.u32 %s187, 1
          %s2068 = scalar_lea.sflag [#allocation6], %s2067
          %s2069 = sand.u32 %s187, 1
          %s2070 = smul.addr %s2069, 32
          %s2071 = scalar_lea.vmem [#allocation13], %s2070
          %2073 = dma.done %s2068, 512
        $region80: #{tpu_custom_call.1} parent=75 // pred_fallthru
          _
      $region76: #{tpu_custom_call.1} parent=5 // pred_fallthru
        _
    $region6: #{tpu_custom_call.1} parent=1 // loop_footer
      %s25 = sadd.s32 1, %s21
    $region7: #{tpu_custom_call.1} parent=1 // loop_footer_branch
      %20 = sbr.rel target = $region3
    $region8: #{tpu_custom_call.1} parent=1 // loop_exit
      _
    %2074 = vsyncpa [#allocation5], 1
    %s2075 = scalar_lea.sflag [#allocation5], 1
    %2076 = vsyncpa %s2075, 1
    %2077 = vsyncpa [#allocation8], 1
    %2078 = vsyncpa [#allocation11], 1
    %2079 = vsyncpa [#allocation6], 1
    %s2080 = scalar_lea.sflag [#allocation6], 1
    %2081 = vsyncpa %s2080, 1

</llo_original>
